<compile_context>
chip_gen: v7x
topology: tpu7x:2x2x1
jax: 0.10.0
libtpu: 0.0.40
codegen_flags: <defaults>
</compile_context>

<pallas_src>
import math
import numpy as np
import jax
import jax.numpy as jnp
from jax.experimental import pallas as pl
from jax.experimental.pallas import tpu as pltpu

# Sizes (matching the SIREN instantiation of CustomMappingNetwork, scaled small).
Z_DIM = 32                       # z_dim            (PyTorch default in paper: 100)
MAP_HIDDEN = 256                 # map_hidden_dim   (hard-coded 256 in the repo)
HIDDEN = 32                      # SIREN hidden_dim (small demo size)
N_FILM = 8
MAP_OUT = (N_FILM + 1) * HIDDEN * 2   # map_output_dim = 576
HALF = MAP_OUT // 2                   # 288


# --------------------------- Pallas kernel -----------------------------------
def mapping_kernel(z_ref, w1, b1, w2, b2, w3, b3, w4f, b4f, w4p, b4p,
                   freq_ref, phase_ref):
    def lrelu(v):                                   # LeakyReLU(0.2): mul + max
        return jnp.maximum(v, 0.2 * v)

    def dense(x_bf16, w, b):                        # bf16 operands, f32 accumulate
        return (jnp.dot(x_bf16, w[...], preferred_element_type=jnp.float32)
                + b[...].astype(jnp.float32))

    z = z_ref[...].astype(jnp.bfloat16)
    h = lrelu(dense(z, w1, b1)).astype(jnp.bfloat16)
    h = lrelu(dense(h, w2, b2)).astype(jnp.bfloat16)
    h = lrelu(dense(h, w3, b3)).astype(jnp.bfloat16)
    # Last Linear, split into the two output halves -> two dense stores.
    freq_ref[...] = dense(h, w4f, b4f)
    phase_ref[...] = dense(h, w4p, b4p)


# --------------------------- param prep (once, outside hot path) ---------------
def prepare_params(params):
    """Cast weights/biases to bf16 and split the final layer into freq/phase halves."""
    c = lambda a: a.astype(jnp.bfloat16)
    return {
        "w1": c(params["mw1"]), "b1": c(params["mb1"]),
        "w2": c(params["mw2"]), "b2": c(params["mb2"]),
        "w3": c(params["mw3"]), "b3": c(params["mb3"]),
        "w4f": c(params["mw4"][:, :HALF]), "b4f": c(params["mb4"][:, :HALF]),
        "w4p": c(params["mw4"][:, HALF:]), "b4p": c(params["mb4"][:, HALF:]),
    }


def _default_block_b(B):
    # Small batch: single invocation (launch-latency bound).
    if B <= 256:
        return B
    # Large batch: big M tiles (feed the MXU), but keep >= 2 parallel grid
    # steps so both v7x TensorCores get work.
    for cand in (512, 256, 128, 64, 32, 16, 8):
        if B % cand == 0 and B // cand >= 2:
            return cand
    return B


# --------------------------- wrapper ------------------------------------------
def mapping_forward(prepped, z, *, block_b=None):
    B, zd = z.shape
    assert zd == Z_DIM
    if block_b is None:
        block_b = _default_block_b(B)
    assert B % block_b == 0
    assert block_b == B or block_b % 8 == 0
    grid = (B // block_b,)

    # Constant-index weight/bias blocks: resident across grid steps, single-buffered.
    def const(shape):
        return pl.BlockSpec(shape, lambda i: (0,) * len(shape),
                            pipeline_mode=pl.Buffered(1))

    in_specs = [
        pl.BlockSpec((block_b, Z_DIM), lambda i: (i, 0)),          # z
        const((Z_DIM, MAP_HIDDEN)), const((1, MAP_HIDDEN)),        # layer 1
        const((MAP_HIDDEN, MAP_HIDDEN)), const((1, MAP_HIDDEN)),   # layer 2
        const((MAP_HIDDEN, MAP_HIDDEN)), const((1, MAP_HIDDEN)),   # layer 3
        const((MAP_HIDDEN, HALF)), const((1, HALF)),               # layer 4 (freq half)
        const((MAP_HIDDEN, HALF)), const((1, HALF)),               # layer 4 (phase half)
    ]
    out_specs = (
        pl.BlockSpec((block_b, HALF), lambda i: (i, 0)),           # frequencies
        pl.BlockSpec((block_b, HALF), lambda i: (i, 0)),           # phase_shifts
    )

    freq, phase = pl.pallas_call(
        mapping_kernel,
        out_shape=(jax.ShapeDtypeStruct((B, HALF), jnp.float32),
                   jax.ShapeDtypeStruct((B, HALF), jnp.float32)),
        grid=grid,
        in_specs=in_specs,
        out_specs=out_specs,
        compiler_params=pltpu.CompilerParams(
            dimension_semantics=("parallel",)),
    )(z, prepped["w1"], prepped["b1"], prepped["w2"], prepped["b2"],
      prepped["w3"], prepped["b3"],
      prepped["w4f"], prepped["b4f"], prepped["w4p"], prepped["b4p"])
    return freq, phase


# --------------------------- deterministic init --------------------------------
def init_params(key):
    keys = iter(jax.random.split(key, 8))

    def unif(shape, bound):                 # nn.Linear default bias init
        return jax.random.uniform(next(keys), shape, jnp.float32, -bound, bound)

    def kaiming(shape):                     # kaiming_normal_(a=0.2, fan_in, leaky_relu)
        fan_in = shape[0]                   # weights stored (in, out)
        std = math.sqrt(2.0 / (1.0 + 0.2 ** 2)) / math.sqrt(fan_in)
        return jax.random.normal(next(keys), shape, jnp.float32) * std

    p = {}
    p["mw1"] = kaiming((Z_DIM, MAP_HIDDEN))
    p["mb1"] = unif((1, MAP_HIDDEN), 1.0 / math.sqrt(Z_DIM))
    p["mw2"] = kaiming((MAP_HIDDEN, MAP_HIDDEN))
    p["mb2"] = unif((1, MAP_HIDDEN), 1.0 / math.sqrt(MAP_HIDDEN))
    p["mw3"] = kaiming((MAP_HIDDEN, MAP_HIDDEN))
    p["mb3"] = unif((1, MAP_HIDDEN), 1.0 / math.sqrt(MAP_HIDDEN))
    p["mw4"] = kaiming((MAP_HIDDEN, MAP_OUT)) * 0.25     # last-layer weight *= 0.25
    p["mb4"] = unif((1, MAP_OUT), 1.0 / math.sqrt(MAP_HIDDEN))
    return p


# --------------------------- pure-JAX reference (f32 "gold") -------------------
def reference_forward(p, z):
    hp = jax.lax.Precision.HIGHEST
    lrelu = lambda v: jnp.where(v >= 0.0, v, 0.2 * v)
    h = lrelu(jnp.dot(z, p["mw1"], precision=hp) + p["mb1"])
    h = lrelu(jnp.dot(h, p["mw2"], precision=hp) + p["mb2"])
    h = lrelu(jnp.dot(h, p["mw3"], precision=hp) + p["mb3"])
    fo = jnp.dot(h, p["mw4"], precision=hp) + p["mb4"]
    return fo[:, :HALF], fo[:, HALF:]


# --------------------------- main -----------------------------------------------
if __name__ == "__main__":
    key = jax.random.PRNGKey(0)
    kp, kz1, kz2 = jax.random.split(key, 3)
    params = init_params(kp)
    prepped = prepare_params(params)          # bf16 weight prep done once

    # Small demo shape: grid collapses to a single invocation (latency path).
    B = 2
    z = jax.random.normal(kz1, (B, Z_DIM), jnp.float32)
    freq, phase = jax.block_until_ready(mapping_forward(prepped, z))
    rfreq, rphase = jax.block_until_ready(reference_forward(params, z))

    assert freq.shape == (B, HALF) and phase.shape == (B, HALF)
    assert bool(jnp.all(jnp.isfinite(freq))) and bool(jnp.all(jnp.isfinite(phase)))
    np.testing.assert_allclose(np.asarray(freq), np.asarray(rfreq), rtol=5e-2, atol=5e-2)
    np.testing.assert_allclose(np.asarray(phase), np.asarray(rphase), rtol=5e-2, atol=5e-2)

    # Larger batch: default tiling picks 512-row tiles -> grid=(2,), so the
    # pipelined path runs and both v7x TensorCores are used.
    B2 = 1024
    z2 = jax.random.normal(kz2, (B2, Z_DIM), jnp.float32)
    freq2, phase2 = jax.block_until_ready(mapping_forward(prepped, z2))
    rfreq2, rphase2 = jax.block_until_ready(reference_forward(params, z2))
    assert freq2.shape == (B2, HALF) and phase2.shape == (B2, HALF)
    np.testing.assert_allclose(np.asarray(freq2), np.asarray(rfreq2), rtol=5e-2, atol=5e-2)
    np.testing.assert_allclose(np.asarray(phase2), np.asarray(rphase2), rtol=5e-2, atol=5e-2)

    print("KERNEL_OK")
</pallas_src>

<mosaic_0001>
module attributes {stable_mosaic.version = 11 : i64} {
  func.func @mapping_kernel(%arg0: i32, %arg1: memref<2x32xf32, #tpu.memory_space<vmem>>, %arg2: memref<32x256xbf16, #tpu.memory_space<vmem>>, %arg3: memref<1x256xbf16, #tpu.memory_space<vmem>>, %arg4: memref<256x256xbf16, #tpu.memory_space<vmem>>, %arg5: memref<1x256xbf16, #tpu.memory_space<vmem>>, %arg6: memref<256x256xbf16, #tpu.memory_space<vmem>>, %arg7: memref<1x256xbf16, #tpu.memory_space<vmem>>, %arg8: memref<256x288xbf16, #tpu.memory_space<vmem>>, %arg9: memref<1x288xbf16, #tpu.memory_space<vmem>>, %arg10: memref<256x288xbf16, #tpu.memory_space<vmem>>, %arg11: memref<1x288xbf16, #tpu.memory_space<vmem>>, %arg12: memref<2x288xf32, #tpu.memory_space<vmem>>, %arg13: memref<2x288xf32, #tpu.memory_space<vmem>>) attributes {dimension_semantics = [#tpu.dimension_semantics<parallel>], iteration_bounds = array<i64: 1>, scalar_prefetch = 0 : i64, scratch_operands = 0 : i64, tpu.core_type = #tpu.core_type<tc>, window_params = [{transform_indices = @transform_0, window_bounds = array<i64: 2, 32>}, {pipeline_mode = #tpu.pipeline_mode<synchronous>, transform_indices = @transform_1, window_bounds = array<i64: 32, 256>}, {pipeline_mode = #tpu.pipeline_mode<synchronous>, transform_indices = @transform_2, window_bounds = array<i64: 1, 256>}, {pipeline_mode = #tpu.pipeline_mode<synchronous>, transform_indices = @transform_3, window_bounds = array<i64: 256, 256>}, {pipeline_mode = #tpu.pipeline_mode<synchronous>, transform_indices = @transform_4, window_bounds = array<i64: 1, 256>}, {pipeline_mode = #tpu.pipeline_mode<synchronous>, transform_indices = @transform_5, window_bounds = array<i64: 256, 256>}, {pipeline_mode = #tpu.pipeline_mode<synchronous>, transform_indices = @transform_6, window_bounds = array<i64: 1, 256>}, {pipeline_mode = #tpu.pipeline_mode<synchronous>, transform_indices = @transform_7, window_bounds = array<i64: 256, 288>}, {pipeline_mode = #tpu.pipeline_mode<synchronous>, transform_indices = @transform_8, window_bounds = array<i64: 1, 288>}, {pipeline_mode = #tpu.pipeline_mode<synchronous>, transform_indices = @transform_9, window_bounds = array<i64: 256, 288>}, {pipeline_mode = #tpu.pipeline_mode<synchronous>, transform_indices = @transform_10, window_bounds = array<i64: 1, 288>}, {transform_indices = @transform_11, window_bounds = array<i64: 2, 288>}, {transform_indices = @transform_12, window_bounds = array<i64: 2, 288>}]} {
    %c0 = arith.constant 0 : index
    %c0_0 = arith.constant 0 : index
    %0 = vector.load %arg1[%c0, %c0_0] : memref<2x32xf32, #tpu.memory_space<vmem>>, vector<2x32xf32>
    %1 = arith.truncf %0 : vector<2x32xf32> to vector<2x32xbf16>
    %c0_1 = arith.constant 0 : index
    %c0_2 = arith.constant 0 : index
    %2 = vector.load %arg2[%c0_1, %c0_2] : memref<32x256xbf16, #tpu.memory_space<vmem>>, vector<32x256xbf16>
    %cst = arith.constant dense<0.000000e+00> : vector<2x256xf32>
    %3 = tpu.matmul %1, %2, %cst {dimension_numbers = #tpu.dot_dimension_numbers<[1], [0], [0], [1], [0, 0, 1, 1], [], []>} : vector<2x32xbf16>, vector<32x256xbf16>, vector<2x256xf32> -> vector<2x256xf32>
    %c0_3 = arith.constant 0 : index
    %c0_4 = arith.constant 0 : index
    %4 = vector.load %arg3[%c0_3, %c0_4] : memref<1x256xbf16, #tpu.memory_space<vmem>>, vector<1x256xbf16>
    %5 = arith.extf %4 : vector<1x256xbf16> to vector<1x256xf32>
    %6 = vector.broadcast %5 : vector<1x256xf32> to vector<2x256xf32>
    %7 = arith.addf %3, %6 : vector<2x256xf32>
    %cst_5 = arith.constant 2.000000e-01 : f32
    %8 = vector.broadcast %cst_5 : f32 to vector<2x256xf32>
    %9 = arith.mulf %8, %7 : vector<2x256xf32>
    %10 = arith.maximumf %7, %9 : vector<2x256xf32>
    %11 = arith.truncf %10 : vector<2x256xf32> to vector<2x256xbf16>
    %c0_6 = arith.constant 0 : index
    %c0_7 = arith.constant 0 : index
    %12 = vector.load %arg4[%c0_6, %c0_7] : memref<256x256xbf16, #tpu.memory_space<vmem>>, vector<256x256xbf16>
    %cst_8 = arith.constant dense<0.000000e+00> : vector<2x256xf32>
    %13 = tpu.matmul %11, %12, %cst_8 {dimension_numbers = #tpu.dot_dimension_numbers<[1], [0], [0], [1], [0, 0, 1, 1], [], []>} : vector<2x256xbf16>, vector<256x256xbf16>, vector<2x256xf32> -> vector<2x256xf32>
    %c0_9 = arith.constant 0 : index
    %c0_10 = arith.constant 0 : index
    %14 = vector.load %arg5[%c0_9, %c0_10] : memref<1x256xbf16, #tpu.memory_space<vmem>>, vector<1x256xbf16>
    %15 = arith.extf %14 : vector<1x256xbf16> to vector<1x256xf32>
    %16 = vector.broadcast %15 : vector<1x256xf32> to vector<2x256xf32>
    %17 = arith.addf %13, %16 : vector<2x256xf32>
    %cst_11 = arith.constant 2.000000e-01 : f32
    %18 = vector.broadcast %cst_11 : f32 to vector<2x256xf32>
    %19 = arith.mulf %18, %17 : vector<2x256xf32>
    %20 = arith.maximumf %17, %19 : vector<2x256xf32>
    %21 = arith.truncf %20 : vector<2x256xf32> to vector<2x256xbf16>
    %c0_12 = arith.constant 0 : index
    %c0_13 = arith.constant 0 : index
    %22 = vector.load %arg6[%c0_12, %c0_13] : memref<256x256xbf16, #tpu.memory_space<vmem>>, vector<256x256xbf16>
    %cst_14 = arith.constant dense<0.000000e+00> : vector<2x256xf32>
    %23 = tpu.matmul %21, %22, %cst_14 {dimension_numbers = #tpu.dot_dimension_numbers<[1], [0], [0], [1], [0, 0, 1, 1], [], []>} : vector<2x256xbf16>, vector<256x256xbf16>, vector<2x256xf32> -> vector<2x256xf32>
    %c0_15 = arith.constant 0 : index
    %c0_16 = arith.constant 0 : index
    %24 = vector.load %arg7[%c0_15, %c0_16] : memref<1x256xbf16, #tpu.memory_space<vmem>>, vector<1x256xbf16>
    %25 = arith.extf %24 : vector<1x256xbf16> to vector<1x256xf32>
    %26 = vector.broadcast %25 : vector<1x256xf32> to vector<2x256xf32>
    %27 = arith.addf %23, %26 : vector<2x256xf32>
    %cst_17 = arith.constant 2.000000e-01 : f32
    %28 = vector.broadcast %cst_17 : f32 to vector<2x256xf32>
    %29 = arith.mulf %28, %27 : vector<2x256xf32>
    %30 = arith.maximumf %27, %29 : vector<2x256xf32>
    %31 = arith.truncf %30 : vector<2x256xf32> to vector<2x256xbf16>
    %c0_18 = arith.constant 0 : index
    %c0_19 = arith.constant 0 : index
    %32 = vector.load %arg8[%c0_18, %c0_19] : memref<256x288xbf16, #tpu.memory_space<vmem>>, vector<256x288xbf16>
    %cst_20 = arith.constant dense<0.000000e+00> : vector<2x288xf32>
    %33 = tpu.matmul %31, %32, %cst_20 {dimension_numbers = #tpu.dot_dimension_numbers<[1], [0], [0], [1], [0, 0, 1, 1], [], []>} : vector<2x256xbf16>, vector<256x288xbf16>, vector<2x288xf32> -> vector<2x288xf32>
    %c0_21 = arith.constant 0 : index
    %c0_22 = arith.constant 0 : index
    %34 = vector.load %arg9[%c0_21, %c0_22] : memref<1x288xbf16, #tpu.memory_space<vmem>>, vector<1x288xbf16>
    %35 = arith.extf %34 : vector<1x288xbf16> to vector<1x288xf32>
    %36 = vector.broadcast %35 : vector<1x288xf32> to vector<2x288xf32>
    %37 = arith.addf %33, %36 : vector<2x288xf32>
    %c0_23 = arith.constant 0 : index
    %c0_24 = arith.constant 0 : index
    %38 = vector.load %arg12[%c0_23, %c0_24] : memref<2x288xf32, #tpu.memory_space<vmem>>, vector<2x288xf32>
    tpu.vector_store %arg12[%c0_23, %c0_24], %37 {strides = array<i32>} : memref<2x288xf32, #tpu.memory_space<vmem>>, vector<2x288xf32>,
    %c0_25 = arith.constant 0 : index
    %c0_26 = arith.constant 0 : index
    %39 = vector.load %arg10[%c0_25, %c0_26] : memref<256x288xbf16, #tpu.memory_space<vmem>>, vector<256x288xbf16>
    %cst_27 = arith.constant dense<0.000000e+00> : vector<2x288xf32>
    %40 = tpu.matmul %31, %39, %cst_27 {dimension_numbers = #tpu.dot_dimension_numbers<[1], [0], [0], [1], [0, 0, 1, 1], [], []>} : vector<2x256xbf16>, vector<256x288xbf16>, vector<2x288xf32> -> vector<2x288xf32>
    %c0_28 = arith.constant 0 : index
    %c0_29 = arith.constant 0 : index
    %41 = vector.load %arg11[%c0_28, %c0_29] : memref<1x288xbf16, #tpu.memory_space<vmem>>, vector<1x288xbf16>
    %42 = arith.extf %41 : vector<1x288xbf16> to vector<1x288xf32>
    %43 = vector.broadcast %42 : vector<1x288xf32> to vector<2x288xf32>
    %44 = arith.addf %40, %43 : vector<2x288xf32>
    %c0_30 = arith.constant 0 : index
    %c0_31 = arith.constant 0 : index
    %45 = vector.load %arg13[%c0_30, %c0_31] : memref<2x288xf32, #tpu.memory_space<vmem>>, vector<2x288xf32>
    tpu.vector_store %arg13[%c0_30, %c0_31], %44 {strides = array<i32>} : memref<2x288xf32, #tpu.memory_space<vmem>>, vector<2x288xf32>,
    return
  }
  func.func @transform_0(%arg0: i32) -> (i32, i32) {
    %c0_i32 = arith.constant 0 : i32
    %c0_i32_0 = arith.constant 0 : i32
    return %arg0, %c0_i32 : i32, i32
  }
  func.func @transform_1(%arg0: i32) -> (i32, i32) {
    %c0_i32 = arith.constant 0 : i32
    %c0_i32_0 = arith.constant 0 : i32
    %c0_i32_1 = arith.constant 0 : i32
    return %c0_i32, %c0_i32_0 : i32, i32
  }
  func.func @transform_2(%arg0: i32) -> (i32, i32) {
    %c0_i32 = arith.constant 0 : i32
    %c0_i32_0 = arith.constant 0 : i32
    %c0_i32_1 = arith.constant 0 : i32
    return %c0_i32, %c0_i32_0 : i32, i32
  }
  func.func @transform_3(%arg0: i32) -> (i32, i32) {
    %c0_i32 = arith.constant 0 : i32
    %c0_i32_0 = arith.constant 0 : i32
    %c0_i32_1 = arith.constant 0 : i32
    return %c0_i32, %c0_i32_0 : i32, i32
  }
  func.func @transform_4(%arg0: i32) -> (i32, i32) {
    %c0_i32 = arith.constant 0 : i32
    %c0_i32_0 = arith.constant 0 : i32
    %c0_i32_1 = arith.constant 0 : i32
    return %c0_i32, %c0_i32_0 : i32, i32
  }
  func.func @transform_5(%arg0: i32) -> (i32, i32) {
    %c0_i32 = arith.constant 0 : i32
    %c0_i32_0 = arith.constant 0 : i32
    %c0_i32_1 = arith.constant 0 : i32
    return %c0_i32, %c0_i32_0 : i32, i32
  }
  func.func @transform_6(%arg0: i32) -> (i32, i32) {
    %c0_i32 = arith.constant 0 : i32
    %c0_i32_0 = arith.constant 0 : i32
    %c0_i32_1 = arith.constant 0 : i32
    return %c0_i32, %c0_i32_0 : i32, i32
  }
  func.func @transform_7(%arg0: i32) -> (i32, i32) {
    %c0_i32 = arith.constant 0 : i32
    %c0_i32_0 = arith.constant 0 : i32
    %c0_i32_1 = arith.constant 0 : i32
    return %c0_i32, %c0_i32_0 : i32, i32
  }
  func.func @transform_8(%arg0: i32) -> (i32, i32) {
    %c0_i32 = arith.constant 0 : i32
    %c0_i32_0 = arith.constant 0 : i32
    %c0_i32_1 = arith.constant 0 : i32
    return %c0_i32, %c0_i32_0 : i32, i32
  }
  func.func @transform_9(%arg0: i32) -> (i32, i32) {
    %c0_i32 = arith.constant 0 : i32
    %c0_i32_0 = arith.constant 0 : i32
    %c0_i32_1 = arith.constant 0 : i32
    return %c0_i32, %c0_i32_0 : i32, i32
  }
  func.func @transform_10(%arg0: i32) -> (i32, i32) {
    %c0_i32 = arith.constant 0 : i32
    %c0_i32_0 = arith.constant 0 : i32
    %c0_i32_1 = arith.constant 0 : i32
    return %c0_i32, %c0_i32_0 : i32, i32
  }
  func.func @transform_11(%arg0: i32) -> (i32, i32) {
    %c0_i32 = arith.constant 0 : i32
    %c0_i32_0 = arith.constant 0 : i32
    return %arg0, %c0_i32 : i32, i32
  }
  func.func @transform_12(%arg0: i32) -> (i32, i32) {
    %c0_i32 = arith.constant 0 : i32
    %c0_i32_0 = arith.constant 0 : i32
    return %arg0, %c0_i32 : i32, i32
  }
}

</mosaic_0001>

<llo_original>
// kernel: tpu_custom_call.1
$region0: #{tpu_custom_call.1}
  #allocation0 [shape = 'u32[]', space=smem, size = 0x4, offset = 0x4, fixed_abs, tag = 'smem constant byte address 0x4 - core index']
  #allocation1 [shape = 'u32[144,128]{1,0:T(1,128)}', space=vmem, size = 0x12000, scoped, tag = 'internal scratch']
  %s0 = inlined_call_operand.vmem [shape: f32[2,32], index: 0, kind: input, shape index: {}]
  %s1 = inlined_call_operand.vmem [shape: bf16[32,256], index: 1, kind: input, shape index: {}]
  %s2 = inlined_call_operand.vmem [shape: bf16[1,256], index: 2, kind: input, shape index: {}]
  %s3 = inlined_call_operand.vmem [shape: bf16[256,256], index: 3, kind: input, shape index: {}]
  %s4 = inlined_call_operand.vmem [shape: bf16[1,256], index: 4, kind: input, shape index: {}]
  %s5 = inlined_call_operand.vmem [shape: bf16[256,256], index: 5, kind: input, shape index: {}]
  %s6 = inlined_call_operand.vmem [shape: bf16[1,256], index: 6, kind: input, shape index: {}]
  %s7 = inlined_call_operand.vmem [shape: bf16[256,288], index: 7, kind: input, shape index: {}]
  %s8 = inlined_call_operand.vmem [shape: bf16[1,288], index: 8, kind: input, shape index: {}]
  %s9 = inlined_call_operand.vmem [shape: bf16[256,288], index: 9, kind: input, shape index: {}]
  %s10 = inlined_call_operand.vmem [shape: bf16[1,288], index: 10, kind: input, shape index: {}]
  %s11 = inlined_call_operand.hbm [shape: f32[2,288], index: 11, kind: output, shape index: {0}]
  %s12 = inlined_call_operand.hbm [shape: f32[2,288], index: 12, kind: output, shape index: {1}]
  %13 = xla_tuple %s11, %s12
  %s14 = sld [smem:[#allocation0]]
  $region62: #{tpu_custom_call.1} parent=0
    _
  %s16 = ssub.s32 1, %s14
  %s17 = scalar_select 0, %s16, %s14
  $region1: #{tpu_custom_call.1} parent=0
    #allocation2 [shape = 'u8[3072]{0}', space=vmem, size = 0xc00, scoped, tag = 'output window, operand 0, single buffered']
    #allocation3 [shape = 's32[1]{0}', space=sflag, size = 0x4, scoped, tag = 'scoped memory for tpu_custom_call.1']
    #allocation4 [shape = 'u8[3072]{0}', space=vmem, size = 0xc00, scoped, tag = 'output window, operand 1, single buffered']
    #allocation5 [shape = 's32[1]{0}', space=sflag, size = 0x4, scoped, tag = 'scoped memory for tpu_custom_call.1']
    %18 = vsyncpa [#allocation3], 0
    %19 = vsyncpa [#allocation5], 0
    // Predicated region
    $region2: #{tpu_custom_call.1} parent=1 // pred_check
      _
    $region3: #{tpu_custom_call.1} parent=1 // pred_check_branch
      %21 = sbr.rel (0) target = $region5
    $region4: #{tpu_custom_call.1} parent=1 // pred_region
      _
    $region5: #{tpu_custom_call.1} parent=1 // pred_fallthru
      _
    // Predicated region
    $region6: #{tpu_custom_call.1} parent=1 // pred_check
      _
    $region7: #{tpu_custom_call.1} parent=1 // pred_check_branch
      %23 = sbr.rel (0) target = $region9
    $region8: #{tpu_custom_call.1} parent=1 // pred_region
      _
    $region9: #{tpu_custom_call.1} parent=1 // pred_fallthru
      _
    // Predicated region
    $region10: #{tpu_custom_call.1} parent=1 // pred_check
      _
    $region11: #{tpu_custom_call.1} parent=1 // pred_check_branch
      %25 = sbr.rel (0) target = $region13
    $region12: #{tpu_custom_call.1} parent=1 // pred_region
      _
    $region13: #{tpu_custom_call.1} parent=1 // pred_fallthru
      _
    // Predicated region
    $region14: #{tpu_custom_call.1} parent=1 // pred_check
      _
    $region15: #{tpu_custom_call.1} parent=1 // pred_check_branch
      %27 = sbr.rel (0) target = $region17
    $region16: #{tpu_custom_call.1} parent=1 // pred_region
      _
    $region17: #{tpu_custom_call.1} parent=1 // pred_fallthru
      _
    // Predicated region
    $region18: #{tpu_custom_call.1} parent=1 // pred_check
      _
    $region19: #{tpu_custom_call.1} parent=1 // pred_check_branch
      %29 = sbr.rel (0) target = $region21
    $region20: #{tpu_custom_call.1} parent=1 // pred_region
      _
    $region21: #{tpu_custom_call.1} parent=1 // pred_fallthru
      _
    // Predicated region
    $region22: #{tpu_custom_call.1} parent=1 // pred_check
      _
    $region23: #{tpu_custom_call.1} parent=1 // pred_check_branch
      %31 = sbr.rel (0) target = $region25
    $region24: #{tpu_custom_call.1} parent=1 // pred_region
      _
    $region25: #{tpu_custom_call.1} parent=1 // pred_fallthru
      _
    // Predicated region
    $region26: #{tpu_custom_call.1} parent=1 // pred_check
      _
    $region27: #{tpu_custom_call.1} parent=1 // pred_check_branch
      %33 = sbr.rel (0) target = $region29
    $region28: #{tpu_custom_call.1} parent=1 // pred_region
      _
    $region29: #{tpu_custom_call.1} parent=1 // pred_fallthru
      _
    // Predicated region
    $region30: #{tpu_custom_call.1} parent=1 // pred_check
      _
    $region31: #{tpu_custom_call.1} parent=1 // pred_check_branch
      %35 = sbr.rel (0) target = $region33
    $region32: #{tpu_custom_call.1} parent=1 // pred_region
      _
    $region33: #{tpu_custom_call.1} parent=1 // pred_fallthru
      _
    // Predicated region
    $region34: #{tpu_custom_call.1} parent=1 // pred_check
      _
    $region35: #{tpu_custom_call.1} parent=1 // pred_check_branch
      %37 = sbr.rel (0) target = $region37
    $region36: #{tpu_custom_call.1} parent=1 // pred_region
      _
    $region37: #{tpu_custom_call.1} parent=1 // pred_fallthru
      _
    // Predicated region
    $region38: #{tpu_custom_call.1} parent=1 // pred_check
      _
    $region39: #{tpu_custom_call.1} parent=1 // pred_check_branch
      %39 = sbr.rel (0) target = $region41
    $region40: #{tpu_custom_call.1} parent=1 // pred_region
      _
    $region41: #{tpu_custom_call.1} parent=1 // pred_fallthru
      _
    // Predicated region
    $region42: #{tpu_custom_call.1} parent=1 // pred_check
      _
    $region43: #{tpu_custom_call.1} parent=1 // pred_check_branch
      %41 = sbr.rel (0) target = $region45
    $region44: #{tpu_custom_call.1} parent=1 // pred_region
      _
    $region45: #{tpu_custom_call.1} parent=1 // pred_fallthru
      _
    %v43 = vld [vmem:[%s0] sm:$0x3]
    %v44 = vpack.c.bf16 %v43, %v43
    %v45 = vld [vmem:[%s1] sm:$0xff]
    %v46 = vld [vmem:[%s1 + $0x8] sm:$0xff]
    %v47 = vld [vmem:[%s1 + $0x10] sm:$0xff]
    %v48 = vld [vmem:[%s1 + $0x18] sm:$0xff]
    %v49 = vld [vmem:[%s2] sm:$0x3]
    %v50 = vunpack.c.l.bf16 %v49
    %v52 = vlaneseq
    %v53 = vshrl.u32 %v52, 7
    %v54 = vsub.s32 0, %v53
    %v55 = vrot.slane %v50, %v54
    %v56 = vlaneseq
    %v57 = vshrl.u32 %v56, 7
    %v58 = vsub.s32 2, %v57
    %v59 = vrot.slane %v50, %v58
    %v62 = vlaneseq
    %v63 = vshrl.u32 %v62, 7
    %v64 = vsub.s32 0, %v63
    %v65 = vrot.slane %v55, %v64
    %v66 = vlaneseq
    %v67 = vshrl.u32 %v66, 7
    %v68 = vsub.s32 0, %v67
    %v69 = vrot.slane %v59, %v68
    %v74 = vunpack.c.l.b16 %v45
    %v75 = vunpack.c.h.b16 %v45
    %v76 = vunpack.c.l.b16 %v46
    %v77 = vunpack.c.h.b16 %v46
    %v78 = vunpack.c.l.b16 %v47
    %v79 = vunpack.c.h.b16 %v47
    %v80 = vunpack.c.l.b16 %v48
    %v81 = vunpack.c.h.b16 %v48
    %v82 = vpack.c.b16 %v76, %v74
    %v83 = vpack.c.b16 %v77, %v75
    %v84 = vpack.c.b16 %v80, %v78
    %v85 = vpack.c.b16 %v81, %v79
    %vm90 = vcmask 261120
    %v92 = vsel %vm90, %v44, 0
    %94 = vmatprep.subr.bf16.mxu0 %v83
    %95 = vmatpush1.bf16.msra.mxu0 %v82
    %96 = vmatprep.subr.bf16.mxu0 %v85
    %97 = vmatpush1.bf16.msra.mxu0 %v84
    %98 = vmatprep.subr.bf16.mxu0 0
    %99 = vmatpush1.bf16.msra.mxu0 0
    %100 = vmatprep.subr.bf16.mxu0 0
    %101 = vmatpush1.bf16.msra.mxu0 0
    %102 = vmatprep.subr.bf16.mxu0 0
    %103 = vmatpush1.bf16.msra.mxu0 0
    %104 = vmatprep.subr.bf16.mxu0 0
    %105 = vmatpush1.bf16.msra.mxu0 0
    %106 = vmatprep.subr.bf16.mxu0 0
    %107 = vmatpush1.bf16.msra.mxu0 0
    %108 = vmatprep.subr.bf16.mxu0 0
    %109 = vmatpush1.bf16.msra.mxu0 0
    %110 = vmatprep.subr.bf16.mxu0 0
    %111 = vmatpush1.bf16.msra.mxu0 0
    %112 = vmatprep.subr.bf16.mxu0 0
    %113 = vmatpush1.bf16.msra.mxu0 0
    %114 = vmatprep.subr.bf16.mxu0 0
    %115 = vmatpush1.bf16.msra.mxu0 0
    %116 = vmatprep.subr.bf16.mxu0 0
    %117 = vmatpush1.bf16.msra.mxu0 0
    %118 = vmatprep.subr.bf16.mxu0 0
    %119 = vmatpush1.bf16.msra.mxu0 0
    %120 = vmatprep.subr.bf16.mxu0 0
    %121 = vmatpush1.bf16.msra.mxu0 0
    %122 = vmatprep.subr.bf16.mxu0 0
    %123 = vmatpush1.bf16.msra.mxu0 0
    %124 = vmatprep.subr.bf16.mxu0 0
    %125 = vmatpush1.bf16.msra.mxu0 0
    %126 = vmatprep.mubr.bf16.mxu0 0
    %127 = vmatmul.mubr.bf16.gmra.mrb[0].mxu0 %v92
    %v128 = vpop.f32.mrb[0].mxu0
    %v129 = vadd.f32 %v65, %v128
    %v130 = vpop.f32.mrb[0].mxu0
    %v131 = vadd.f32 %v69, %v130
    %v132 = vpop.f32.mrb[0].mxu0
    %v133 = vpop.f32.mrb[0].mxu0
    %134 = vdwg.mxu0
    %v135 = vmul.f32 %v129, 0.2
    %v136 = vmul.f32 %v131, 0.2
    %v137 = vmax.f32 %v129, %v135
    %v138 = vmax.f32 %v131, %v136
    %v139 = vpack.c.bf16 %v137, %v137
    %v140 = vpack.c.bf16 %v138, %v138
    %v141 = vld [vmem:[%s3] sm:$0xff]
    %v142 = vld [vmem:[%s3 + $0x8] sm:$0xff]
    %v143 = vld [vmem:[%s3 + $0x10] sm:$0xff]
    %v144 = vld [vmem:[%s3 + $0x18] sm:$0xff]
    %v145 = vld [vmem:[%s3 + $0x20] sm:$0xff]
    %v146 = vld [vmem:[%s3 + $0x28] sm:$0xff]
    %v147 = vld [vmem:[%s3 + $0x30] sm:$0xff]
    %v148 = vld [vmem:[%s3 + $0x38] sm:$0xff]
    %v149 = vld [vmem:[%s3 + $0x40] sm:$0xff]
    %v150 = vld [vmem:[%s3 + $0x48] sm:$0xff]
    %v151 = vld [vmem:[%s3 + $0x50] sm:$0xff]
    %v152 = vld [vmem:[%s3 + $0x58] sm:$0xff]
    %v153 = vld [vmem:[%s3 + $0x60] sm:$0xff]
    %v154 = vld [vmem:[%s3 + $0x68] sm:$0xff]
    %v155 = vld [vmem:[%s3 + $0x70] sm:$0xff]
    %v156 = vld [vmem:[%s3 + $0x78] sm:$0xff]
    %v157 = vld [vmem:[%s3 + $0x80] sm:$0xff]
    %v158 = vld [vmem:[%s3 + $0x88] sm:$0xff]
    %v159 = vld [vmem:[%s3 + $0x90] sm:$0xff]
    %v160 = vld [vmem:[%s3 + $0x98] sm:$0xff]
    %v161 = vld [vmem:[%s3 + $0xa0] sm:$0xff]
    %v162 = vld [vmem:[%s3 + $0xa8] sm:$0xff]
    %v163 = vld [vmem:[%s3 + $0xb0] sm:$0xff]
    %v164 = vld [vmem:[%s3 + $0xb8] sm:$0xff]
    %v165 = vld [vmem:[%s3 + $0xc0] sm:$0xff]
    %v166 = vld [vmem:[%s3 + $0xc8] sm:$0xff]
    %v167 = vld [vmem:[%s3 + $0xd0] sm:$0xff]
    %v168 = vld [vmem:[%s3 + $0xd8] sm:$0xff]
    %v169 = vld [vmem:[%s3 + $0xe0] sm:$0xff]
    %v170 = vld [vmem:[%s3 + $0xe8] sm:$0xff]
    %v171 = vld [vmem:[%s3 + $0xf0] sm:$0xff]
    %v172 = vld [vmem:[%s3 + $0xf8] sm:$0xff]
    %v173 = vld [vmem:[%s4] sm:$0x3]
    %v174 = vunpack.c.l.bf16 %v173
    %v176 = vlaneseq
    %v177 = vshrl.u32 %v176, 7
    %v178 = vsub.s32 0, %v177
    %v179 = vrot.slane %v174, %v178
    %v180 = vlaneseq
    %v181 = vshrl.u32 %v180, 7
    %v182 = vsub.s32 2, %v181
    %v183 = vrot.slane %v174, %v182
    %v186 = vlaneseq
    %v187 = vshrl.u32 %v186, 7
    %v188 = vsub.s32 0, %v187
    %v189 = vrot.slane %v179, %v188
    %v190 = vlaneseq
    %v191 = vshrl.u32 %v190, 7
    %v192 = vsub.s32 0, %v191
    %v193 = vrot.slane %v183, %v192
    %v226 = vunpack.c.l.b16 %v141
    %v227 = vunpack.c.h.b16 %v141
    %v228 = vunpack.c.l.b16 %v142
    %v229 = vunpack.c.h.b16 %v142
    %v230 = vunpack.c.l.b16 %v143
    %v231 = vunpack.c.h.b16 %v143
    %v232 = vunpack.c.l.b16 %v144
    %v233 = vunpack.c.h.b16 %v144
    %v234 = vunpack.c.l.b16 %v145
    %v235 = vunpack.c.h.b16 %v145
    %v236 = vunpack.c.l.b16 %v146
    %v237 = vunpack.c.h.b16 %v146
    %v238 = vunpack.c.l.b16 %v147
    %v239 = vunpack.c.h.b16 %v147
    %v240 = vunpack.c.l.b16 %v148
    %v241 = vunpack.c.h.b16 %v148
    %v242 = vunpack.c.l.b16 %v149
    %v243 = vunpack.c.h.b16 %v149
    %v244 = vunpack.c.l.b16 %v150
    %v245 = vunpack.c.h.b16 %v150
    %v246 = vunpack.c.l.b16 %v151
    %v247 = vunpack.c.h.b16 %v151
    %v248 = vunpack.c.l.b16 %v152
    %v249 = vunpack.c.h.b16 %v152
    %v250 = vunpack.c.l.b16 %v153
    %v251 = vunpack.c.h.b16 %v153
    %v252 = vunpack.c.l.b16 %v154
    %v253 = vunpack.c.h.b16 %v154
    %v254 = vunpack.c.l.b16 %v155
    %v255 = vunpack.c.h.b16 %v155
    %v256 = vunpack.c.l.b16 %v156
    %v257 = vunpack.c.h.b16 %v156
    %v258 = vunpack.c.l.b16 %v157
    %v259 = vunpack.c.h.b16 %v157
    %v260 = vunpack.c.l.b16 %v158
    %v261 = vunpack.c.h.b16 %v158
    %v262 = vunpack.c.l.b16 %v159
    %v263 = vunpack.c.h.b16 %v159
    %v264 = vunpack.c.l.b16 %v160
    %v265 = vunpack.c.h.b16 %v160
    %v266 = vunpack.c.l.b16 %v161
    %v267 = vunpack.c.h.b16 %v161
    %v268 = vunpack.c.l.b16 %v162
    %v269 = vunpack.c.h.b16 %v162
    %v270 = vunpack.c.l.b16 %v163
    %v271 = vunpack.c.h.b16 %v163
    %v272 = vunpack.c.l.b16 %v164
    %v273 = vunpack.c.h.b16 %v164
    %v274 = vunpack.c.l.b16 %v165
    %v275 = vunpack.c.h.b16 %v165
    %v276 = vunpack.c.l.b16 %v166
    %v277 = vunpack.c.h.b16 %v166
    %v278 = vunpack.c.l.b16 %v167
    %v279 = vunpack.c.h.b16 %v167
    %v280 = vunpack.c.l.b16 %v168
    %v281 = vunpack.c.h.b16 %v168
    %v282 = vunpack.c.l.b16 %v169
    %v283 = vunpack.c.h.b16 %v169
    %v284 = vunpack.c.l.b16 %v170
    %v285 = vunpack.c.h.b16 %v170
    %v286 = vunpack.c.l.b16 %v171
    %v287 = vunpack.c.h.b16 %v171
    %v288 = vunpack.c.l.b16 %v172
    %v289 = vunpack.c.h.b16 %v172
    %v290 = vpack.c.b16 %v228, %v226
    %v291 = vpack.c.b16 %v229, %v227
    %v292 = vpack.c.b16 %v232, %v230
    %v293 = vpack.c.b16 %v233, %v231
    %v294 = vpack.c.b16 %v236, %v234
    %v295 = vpack.c.b16 %v237, %v235
    %v296 = vpack.c.b16 %v240, %v238
    %v297 = vpack.c.b16 %v241, %v239
    %v298 = vpack.c.b16 %v244, %v242
    %v299 = vpack.c.b16 %v245, %v243
    %v300 = vpack.c.b16 %v248, %v246
    %v301 = vpack.c.b16 %v249, %v247
    %v302 = vpack.c.b16 %v252, %v250
    %v303 = vpack.c.b16 %v253, %v251
    %v304 = vpack.c.b16 %v256, %v254
    %v305 = vpack.c.b16 %v257, %v255
    %v306 = vpack.c.b16 %v260, %v258
    %v307 = vpack.c.b16 %v261, %v259
    %v308 = vpack.c.b16 %v264, %v262
    %v309 = vpack.c.b16 %v265, %v263
    %v310 = vpack.c.b16 %v268, %v266
    %v311 = vpack.c.b16 %v269, %v267
    %v312 = vpack.c.b16 %v272, %v270
    %v313 = vpack.c.b16 %v273, %v271
    %v314 = vpack.c.b16 %v276, %v274
    %v315 = vpack.c.b16 %v277, %v275
    %v316 = vpack.c.b16 %v280, %v278
    %v317 = vpack.c.b16 %v281, %v279
    %v318 = vpack.c.b16 %v284, %v282
    %v319 = vpack.c.b16 %v285, %v283
    %v320 = vpack.c.b16 %v288, %v286
    %v321 = vpack.c.b16 %v289, %v287
    %354 = vmatprep.subr.bf16.mxu0 %v291
    %355 = vmatpush1.bf16.msra.mxu0 %v290
    %356 = vmatprep.subr.bf16.mxu0 %v293
    %357 = vmatpush1.bf16.msra.mxu0 %v292
    %358 = vmatprep.subr.bf16.mxu0 %v295
    %359 = vmatpush1.bf16.msra.mxu0 %v294
    %360 = vmatprep.subr.bf16.mxu0 %v297
    %361 = vmatpush1.bf16.msra.mxu0 %v296
    %362 = vmatprep.subr.bf16.mxu0 %v299
    %363 = vmatpush1.bf16.msra.mxu0 %v298
    %364 = vmatprep.subr.bf16.mxu0 %v301
    %365 = vmatpush1.bf16.msra.mxu0 %v300
    %366 = vmatprep.subr.bf16.mxu0 %v303
    %367 = vmatpush1.bf16.msra.mxu0 %v302
    %368 = vmatprep.subr.bf16.mxu0 %v305
    %369 = vmatpush1.bf16.msra.mxu0 %v304
    %370 = vmatprep.subr.bf16.mxu0 %v307
    %371 = vmatpush1.bf16.msra.mxu0 %v306
    %372 = vmatprep.subr.bf16.mxu0 %v309
    %373 = vmatpush1.bf16.msra.mxu0 %v308
    %374 = vmatprep.subr.bf16.mxu0 %v311
    %375 = vmatpush1.bf16.msra.mxu0 %v310
    %376 = vmatprep.subr.bf16.mxu0 %v313
    %377 = vmatpush1.bf16.msra.mxu0 %v312
    %378 = vmatprep.subr.bf16.mxu0 %v315
    %379 = vmatpush1.bf16.msra.mxu0 %v314
    %380 = vmatprep.subr.bf16.mxu0 %v317
    %381 = vmatpush1.bf16.msra.mxu0 %v316
    %382 = vmatprep.subr.bf16.mxu0 %v319
    %383 = vmatpush1.bf16.msra.mxu0 %v318
    %384 = vmatprep.subr.bf16.mxu0 %v321
    %385 = vmatpush1.bf16.msra.mxu0 %v320
    %386 = vmatprep.mubr.bf16.mxu0 %v140
    %387 = vmatmul.mubr.bf16.gmra.mrb[0].mxu0 %v139
    %v388 = vpop.f32.mrb[0].mxu0
    %v389 = vadd.f32 %v189, %v388
    %v390 = vpop.f32.mrb[0].mxu0
    %v391 = vadd.f32 %v193, %v390
    %v392 = vpop.f32.mrb[0].mxu0
    %v393 = vpop.f32.mrb[0].mxu0
    %394 = vdwg.mxu0
    %v395 = vmul.f32 %v389, 0.2
    %v396 = vmul.f32 %v391, 0.2
    %v397 = vmax.f32 %v389, %v395
    %v398 = vmax.f32 %v391, %v396
    %v399 = vpack.c.bf16 %v397, %v397
    %v400 = vpack.c.bf16 %v398, %v398
    %v401 = vld [vmem:[%s5] sm:$0xff]
    %v402 = vld [vmem:[%s5 + $0x8] sm:$0xff]
    %v403 = vld [vmem:[%s5 + $0x10] sm:$0xff]
    %v404 = vld [vmem:[%s5 + $0x18] sm:$0xff]
    %v405 = vld [vmem:[%s5 + $0x20] sm:$0xff]
    %v406 = vld [vmem:[%s5 + $0x28] sm:$0xff]
    %v407 = vld [vmem:[%s5 + $0x30] sm:$0xff]
    %v408 = vld [vmem:[%s5 + $0x38] sm:$0xff]
    %v409 = vld [vmem:[%s5 + $0x40] sm:$0xff]
    %v410 = vld [vmem:[%s5 + $0x48] sm:$0xff]
    %v411 = vld [vmem:[%s5 + $0x50] sm:$0xff]
    %v412 = vld [vmem:[%s5 + $0x58] sm:$0xff]
    %v413 = vld [vmem:[%s5 + $0x60] sm:$0xff]
    %v414 = vld [vmem:[%s5 + $0x68] sm:$0xff]
    %v415 = vld [vmem:[%s5 + $0x70] sm:$0xff]
    %v416 = vld [vmem:[%s5 + $0x78] sm:$0xff]
    %v417 = vld [vmem:[%s5 + $0x80] sm:$0xff]
    %v418 = vld [vmem:[%s5 + $0x88] sm:$0xff]
    %v419 = vld [vmem:[%s5 + $0x90] sm:$0xff]
    %v420 = vld [vmem:[%s5 + $0x98] sm:$0xff]
    %v421 = vld [vmem:[%s5 + $0xa0] sm:$0xff]
    %v422 = vld [vmem:[%s5 + $0xa8] sm:$0xff]
    %v423 = vld [vmem:[%s5 + $0xb0] sm:$0xff]
    %v424 = vld [vmem:[%s5 + $0xb8] sm:$0xff]
    %v425 = vld [vmem:[%s5 + $0xc0] sm:$0xff]
    %v426 = vld [vmem:[%s5 + $0xc8] sm:$0xff]
    %v427 = vld [vmem:[%s5 + $0xd0] sm:$0xff]
    %v428 = vld [vmem:[%s5 + $0xd8] sm:$0xff]
    %v429 = vld [vmem:[%s5 + $0xe0] sm:$0xff]
    %v430 = vld [vmem:[%s5 + $0xe8] sm:$0xff]
    %v431 = vld [vmem:[%s5 + $0xf0] sm:$0xff]
    %v432 = vld [vmem:[%s5 + $0xf8] sm:$0xff]
    %v433 = vld [vmem:[%s6] sm:$0x3]
    %v434 = vunpack.c.l.bf16 %v433
    %v436 = vlaneseq
    %v437 = vshrl.u32 %v436, 7
    %v438 = vsub.s32 0, %v437
    %v439 = vrot.slane %v434, %v438
    %v440 = vlaneseq
    %v441 = vshrl.u32 %v440, 7
    %v442 = vsub.s32 2, %v441
    %v443 = vrot.slane %v434, %v442
    %v446 = vlaneseq
    %v447 = vshrl.u32 %v446, 7
    %v448 = vsub.s32 0, %v447
    %v449 = vrot.slane %v439, %v448
    %v450 = vlaneseq
    %v451 = vshrl.u32 %v450, 7
    %v452 = vsub.s32 0, %v451
    %v453 = vrot.slane %v443, %v452
    %v486 = vunpack.c.l.b16 %v401
    %v487 = vunpack.c.h.b16 %v401
    %v488 = vunpack.c.l.b16 %v402
    %v489 = vunpack.c.h.b16 %v402
    %v490 = vunpack.c.l.b16 %v403
    %v491 = vunpack.c.h.b16 %v403
    %v492 = vunpack.c.l.b16 %v404
    %v493 = vunpack.c.h.b16 %v404
    %v494 = vunpack.c.l.b16 %v405
    %v495 = vunpack.c.h.b16 %v405
    %v496 = vunpack.c.l.b16 %v406
    %v497 = vunpack.c.h.b16 %v406
    %v498 = vunpack.c.l.b16 %v407
    %v499 = vunpack.c.h.b16 %v407
    %v500 = vunpack.c.l.b16 %v408
    %v501 = vunpack.c.h.b16 %v408
    %v502 = vunpack.c.l.b16 %v409
    %v503 = vunpack.c.h.b16 %v409
    %v504 = vunpack.c.l.b16 %v410
    %v505 = vunpack.c.h.b16 %v410
    %v506 = vunpack.c.l.b16 %v411
    %v507 = vunpack.c.h.b16 %v411
    %v508 = vunpack.c.l.b16 %v412
    %v509 = vunpack.c.h.b16 %v412
    %v510 = vunpack.c.l.b16 %v413
    %v511 = vunpack.c.h.b16 %v413
    %v512 = vunpack.c.l.b16 %v414
    %v513 = vunpack.c.h.b16 %v414
    %v514 = vunpack.c.l.b16 %v415
    %v515 = vunpack.c.h.b16 %v415
    %v516 = vunpack.c.l.b16 %v416
    %v517 = vunpack.c.h.b16 %v416
    %v518 = vunpack.c.l.b16 %v417
    %v519 = vunpack.c.h.b16 %v417
    %v520 = vunpack.c.l.b16 %v418
    %v521 = vunpack.c.h.b16 %v418
    %v522 = vunpack.c.l.b16 %v419
    %v523 = vunpack.c.h.b16 %v419
    %v524 = vunpack.c.l.b16 %v420
    %v525 = vunpack.c.h.b16 %v420
    %v526 = vunpack.c.l.b16 %v421
    %v527 = vunpack.c.h.b16 %v421
    %v528 = vunpack.c.l.b16 %v422
    %v529 = vunpack.c.h.b16 %v422
    %v530 = vunpack.c.l.b16 %v423
    %v531 = vunpack.c.h.b16 %v423
    %v532 = vunpack.c.l.b16 %v424
    %v533 = vunpack.c.h.b16 %v424
    %v534 = vunpack.c.l.b16 %v425
    %v535 = vunpack.c.h.b16 %v425
    %v536 = vunpack.c.l.b16 %v426
    %v537 = vunpack.c.h.b16 %v426
    %v538 = vunpack.c.l.b16 %v427
    %v539 = vunpack.c.h.b16 %v427
    %v540 = vunpack.c.l.b16 %v428
    %v541 = vunpack.c.h.b16 %v428
    %v542 = vunpack.c.l.b16 %v429
    %v543 = vunpack.c.h.b16 %v429
    %v544 = vunpack.c.l.b16 %v430
    %v545 = vunpack.c.h.b16 %v430
    %v546 = vunpack.c.l.b16 %v431
    %v547 = vunpack.c.h.b16 %v431
    %v548 = vunpack.c.l.b16 %v432
    %v549 = vunpack.c.h.b16 %v432
    %v550 = vpack.c.b16 %v488, %v486
    %v551 = vpack.c.b16 %v489, %v487
    %v552 = vpack.c.b16 %v492, %v490
    %v553 = vpack.c.b16 %v493, %v491
    %v554 = vpack.c.b16 %v496, %v494
    %v555 = vpack.c.b16 %v497, %v495
    %v556 = vpack.c.b16 %v500, %v498
    %v557 = vpack.c.b16 %v501, %v499
    %v558 = vpack.c.b16 %v504, %v502
    %v559 = vpack.c.b16 %v505, %v503
    %v560 = vpack.c.b16 %v508, %v506
    %v561 = vpack.c.b16 %v509, %v507
    %v562 = vpack.c.b16 %v512, %v510
    %v563 = vpack.c.b16 %v513, %v511
    %v564 = vpack.c.b16 %v516, %v514
    %v565 = vpack.c.b16 %v517, %v515
    %v566 = vpack.c.b16 %v520, %v518
    %v567 = vpack.c.b16 %v521, %v519
    %v568 = vpack.c.b16 %v524, %v522
    %v569 = vpack.c.b16 %v525, %v523
    %v570 = vpack.c.b16 %v528, %v526
    %v571 = vpack.c.b16 %v529, %v527
    %v572 = vpack.c.b16 %v532, %v530
    %v573 = vpack.c.b16 %v533, %v531
    %v574 = vpack.c.b16 %v536, %v534
    %v575 = vpack.c.b16 %v537, %v535
    %v576 = vpack.c.b16 %v540, %v538
    %v577 = vpack.c.b16 %v541, %v539
    %v578 = vpack.c.b16 %v544, %v542
    %v579 = vpack.c.b16 %v545, %v543
    %v580 = vpack.c.b16 %v548, %v546
    %v581 = vpack.c.b16 %v549, %v547
    %614 = vmatprep.subr.bf16.mxu0 %v551
    %615 = vmatpush1.bf16.msra.mxu0 %v550
    %616 = vmatprep.subr.bf16.mxu0 %v553
    %617 = vmatpush1.bf16.msra.mxu0 %v552
    %618 = vmatprep.subr.bf16.mxu0 %v555
    %619 = vmatpush1.bf16.msra.mxu0 %v554
    %620 = vmatprep.subr.bf16.mxu0 %v557
    %621 = vmatpush1.bf16.msra.mxu0 %v556
    %622 = vmatprep.subr.bf16.mxu0 %v559
    %623 = vmatpush1.bf16.msra.mxu0 %v558
    %624 = vmatprep.subr.bf16.mxu0 %v561
    %625 = vmatpush1.bf16.msra.mxu0 %v560
    %626 = vmatprep.subr.bf16.mxu0 %v563
    %627 = vmatpush1.bf16.msra.mxu0 %v562
    %628 = vmatprep.subr.bf16.mxu0 %v565
    %629 = vmatpush1.bf16.msra.mxu0 %v564
    %630 = vmatprep.subr.bf16.mxu0 %v567
    %631 = vmatpush1.bf16.msra.mxu0 %v566
    %632 = vmatprep.subr.bf16.mxu0 %v569
    %633 = vmatpush1.bf16.msra.mxu0 %v568
    %634 = vmatprep.subr.bf16.mxu0 %v571
    %635 = vmatpush1.bf16.msra.mxu0 %v570
    %636 = vmatprep.subr.bf16.mxu0 %v573
    %637 = vmatpush1.bf16.msra.mxu0 %v572
    %638 = vmatprep.subr.bf16.mxu0 %v575
    %639 = vmatpush1.bf16.msra.mxu0 %v574
    %640 = vmatprep.subr.bf16.mxu0 %v577
    %641 = vmatpush1.bf16.msra.mxu0 %v576
    %642 = vmatprep.subr.bf16.mxu0 %v579
    %643 = vmatpush1.bf16.msra.mxu0 %v578
    %644 = vmatprep.subr.bf16.mxu0 %v581
    %645 = vmatpush1.bf16.msra.mxu0 %v580
    %646 = vmatprep.mubr.bf16.mxu0 %v400
    %647 = vmatmul.mubr.bf16.gmra.mrb[0].mxu0 %v399
    %v648 = vpop.f32.mrb[0].mxu0
    %v649 = vadd.f32 %v449, %v648
    %v650 = vpop.f32.mrb[0].mxu0
    %v651 = vadd.f32 %v453, %v650
    %v652 = vpop.f32.mrb[0].mxu0
    %v653 = vpop.f32.mrb[0].mxu0
    %654 = vdwg.mxu0
    %v655 = vmul.f32 %v649, 0.2
    %v656 = vmul.f32 %v651, 0.2
    %v657 = vmax.f32 %v649, %v655
    %v658 = vmax.f32 %v651, %v656
    %v659 = vpack.c.bf16 %v657, %v657
    %v660 = vpack.c.bf16 %v658, %v658
    %v661 = vld [vmem:[%s7] sm:$0xff]
    %v662 = vld [vmem:[%s7 + $0x8] sm:$0xf]
    %v663 = vld [vmem:[%s7 + $0xc] sm:$0xff]
    %v664 = vld [vmem:[%s7 + $0x14] sm:$0xf]
    %v665 = vld [vmem:[%s7 + $0x18] sm:$0xff]
    %v666 = vld [vmem:[%s7 + $0x20] sm:$0xf]
    %v667 = vld [vmem:[%s7 + $0x24] sm:$0xff]
    %v668 = vld [vmem:[%s7 + $0x2c] sm:$0xf]
    %v669 = vld [vmem:[%s7 + $0x30] sm:$0xff]
    %v670 = vld [vmem:[%s7 + $0x38] sm:$0xf]
    %v671 = vld [vmem:[%s7 + $0x3c] sm:$0xff]
    %v672 = vld [vmem:[%s7 + $0x44] sm:$0xf]
    %v673 = vld [vmem:[%s7 + $0x48] sm:$0xff]
    %v674 = vld [vmem:[%s7 + $0x50] sm:$0xf]
    %v675 = vld [vmem:[%s7 + $0x54] sm:$0xff]
    %v676 = vld [vmem:[%s7 + $0x5c] sm:$0xf]
    %v677 = vld [vmem:[%s7 + $0x60] sm:$0xff]
    %v678 = vld [vmem:[%s7 + $0x68] sm:$0xf]
    %v679 = vld [vmem:[%s7 + $0x6c] sm:$0xff]
    %v680 = vld [vmem:[%s7 + $0x74] sm:$0xf]
    %v681 = vld [vmem:[%s7 + $0x78] sm:$0xff]
    %v682 = vld [vmem:[%s7 + $0x80] sm:$0xf]
    %v683 = vld [vmem:[%s7 + $0x84] sm:$0xff]
    %v684 = vld [vmem:[%s7 + $0x8c] sm:$0xf]
    %v685 = vld [vmem:[%s7 + $0x90] sm:$0xff]
    %v686 = vld [vmem:[%s7 + $0x98] sm:$0xf]
    %v687 = vld [vmem:[%s7 + $0x9c] sm:$0xff]
    %v688 = vld [vmem:[%s7 + $0xa4] sm:$0xf]
    %v689 = vld [vmem:[%s7 + $0xa8] sm:$0xff]
    %v690 = vld [vmem:[%s7 + $0xb0] sm:$0xf]
    %v691 = vld [vmem:[%s7 + $0xb4] sm:$0xff]
    %v692 = vld [vmem:[%s7 + $0xbc] sm:$0xf]
    %v693 = vld [vmem:[%s7 + $0xc0] sm:$0xff]
    %v694 = vld [vmem:[%s7 + $0xc8] sm:$0xf]
    %v695 = vld [vmem:[%s7 + $0xcc] sm:$0xff]
    %v696 = vld [vmem:[%s7 + $0xd4] sm:$0xf]
    %v697 = vld [vmem:[%s7 + $0xd8] sm:$0xff]
    %v698 = vld [vmem:[%s7 + $0xe0] sm:$0xf]
    %v699 = vld [vmem:[%s7 + $0xe4] sm:$0xff]
    %v700 = vld [vmem:[%s7 + $0xec] sm:$0xf]
    %v701 = vld [vmem:[%s7 + $0xf0] sm:$0xff]
    %v702 = vld [vmem:[%s7 + $0xf8] sm:$0xf]
    %v703 = vld [vmem:[%s7 + $0xfc] sm:$0xff]
    %v704 = vld [vmem:[%s7 + $0x104] sm:$0xf]
    %v705 = vld [vmem:[%s7 + $0x108] sm:$0xff]
    %v706 = vld [vmem:[%s7 + $0x110] sm:$0xf]
    %v707 = vld [vmem:[%s7 + $0x114] sm:$0xff]
    %v708 = vld [vmem:[%s7 + $0x11c] sm:$0xf]
    %v709 = vld [vmem:[%s7 + $0x120] sm:$0xff]
    %v710 = vld [vmem:[%s7 + $0x128] sm:$0xf]
    %v711 = vld [vmem:[%s7 + $0x12c] sm:$0xff]
    %v712 = vld [vmem:[%s7 + $0x134] sm:$0xf]
    %v713 = vld [vmem:[%s7 + $0x138] sm:$0xff]
    %v714 = vld [vmem:[%s7 + $0x140] sm:$0xf]
    %v715 = vld [vmem:[%s7 + $0x144] sm:$0xff]
    %v716 = vld [vmem:[%s7 + $0x14c] sm:$0xf]
    %v717 = vld [vmem:[%s7 + $0x150] sm:$0xff]
    %v718 = vld [vmem:[%s7 + $0x158] sm:$0xf]
    %v719 = vld [vmem:[%s7 + $0x15c] sm:$0xff]
    %v720 = vld [vmem:[%s7 + $0x164] sm:$0xf]
    %v721 = vld [vmem:[%s7 + $0x168] sm:$0xff]
    %v722 = vld [vmem:[%s7 + $0x170] sm:$0xf]
    %v723 = vld [vmem:[%s7 + $0x174] sm:$0xff]
    %v724 = vld [vmem:[%s7 + $0x17c] sm:$0xf]
    %v725 = vld [vmem:[%s8] sm:$0x7]
    %v726 = vunpack.c.l.bf16 %v725
    %v728 = vlaneseq
    %v729 = vshrl.u32 %v728, 7
    %v730 = vsub.s32 0, %v729
    %v731 = vrot.slane %v726, %v730
    %v732 = vlaneseq
    %v733 = vshrl.u32 %v732, 7
    %v734 = vsub.s32 2, %v733
    %v735 = vrot.slane %v726, %v734
    %v736 = vlaneseq
    %v737 = vshrl.u32 %v736, 7
    %v738 = vsub.s32 4, %v737
    %v739 = vrot.slane %v726, %v738
    %v743 = vlaneseq
    %v744 = vshrl.u32 %v743, 7
    %v745 = vsub.s32 0, %v744
    %v746 = vrot.slane %v731, %v745
    %v747 = vlaneseq
    %v748 = vshrl.u32 %v747, 7
    %v749 = vsub.s32 0, %v748
    %v750 = vrot.slane %v735, %v749
    %v751 = vlaneseq
    %v752 = vshrl.u32 %v751, 7
    %v753 = vsub.s32 0, %v752
    %v754 = vrot.slane %v739, %v753
    %v819 = vunpack.c.l.b16 %v661
    %v820 = vunpack.c.h.b16 %v661
    %v821 = vunpack.c.l.b16 %v662
    %v822 = vunpack.c.l.b16 %v663
    %v823 = vunpack.c.h.b16 %v663
    %v824 = vunpack.c.l.b16 %v664
    %v825 = vunpack.c.l.b16 %v665
    %v826 = vunpack.c.h.b16 %v665
    %v827 = vunpack.c.l.b16 %v666
    %v828 = vunpack.c.l.b16 %v667
    %v829 = vunpack.c.h.b16 %v667
    %v830 = vunpack.c.l.b16 %v668
    %v831 = vunpack.c.l.b16 %v669
    %v832 = vunpack.c.h.b16 %v669
    %v833 = vunpack.c.l.b16 %v670
    %v834 = vunpack.c.l.b16 %v671
    %v835 = vunpack.c.h.b16 %v671
    %v836 = vunpack.c.l.b16 %v672
    %v837 = vunpack.c.l.b16 %v673
    %v838 = vunpack.c.h.b16 %v673
    %v839 = vunpack.c.l.b16 %v674
    %v840 = vunpack.c.l.b16 %v675
    %v841 = vunpack.c.h.b16 %v675
    %v842 = vunpack.c.l.b16 %v676
    %v843 = vunpack.c.l.b16 %v677
    %v844 = vunpack.c.h.b16 %v677
    %v845 = vunpack.c.l.b16 %v678
    %v846 = vunpack.c.l.b16 %v679
    %v847 = vunpack.c.h.b16 %v679
    %v848 = vunpack.c.l.b16 %v680
    %v849 = vunpack.c.l.b16 %v681
    %v850 = vunpack.c.h.b16 %v681
    %v851 = vunpack.c.l.b16 %v682
    %v852 = vunpack.c.l.b16 %v683
    %v853 = vunpack.c.h.b16 %v683
    %v854 = vunpack.c.l.b16 %v684
    %v855 = vunpack.c.l.b16 %v685
    %v856 = vunpack.c.h.b16 %v685
    %v857 = vunpack.c.l.b16 %v686
    %v858 = vunpack.c.l.b16 %v687
    %v859 = vunpack.c.h.b16 %v687
    %v860 = vunpack.c.l.b16 %v688
    %v861 = vunpack.c.l.b16 %v689
    %v862 = vunpack.c.h.b16 %v689
    %v863 = vunpack.c.l.b16 %v690
    %v864 = vunpack.c.l.b16 %v691
    %v865 = vunpack.c.h.b16 %v691
    %v866 = vunpack.c.l.b16 %v692
    %v867 = vunpack.c.l.b16 %v693
    %v868 = vunpack.c.h.b16 %v693
    %v869 = vunpack.c.l.b16 %v694
    %v870 = vunpack.c.l.b16 %v695
    %v871 = vunpack.c.h.b16 %v695
    %v872 = vunpack.c.l.b16 %v696
    %v873 = vunpack.c.l.b16 %v697
    %v874 = vunpack.c.h.b16 %v697
    %v875 = vunpack.c.l.b16 %v698
    %v876 = vunpack.c.l.b16 %v699
    %v877 = vunpack.c.h.b16 %v699
    %v878 = vunpack.c.l.b16 %v700
    %v879 = vunpack.c.l.b16 %v701
    %v880 = vunpack.c.h.b16 %v701
    %v881 = vunpack.c.l.b16 %v702
    %v882 = vunpack.c.l.b16 %v703
    %v883 = vunpack.c.h.b16 %v703
    %v884 = vunpack.c.l.b16 %v704
    %v885 = vunpack.c.l.b16 %v705
    %v886 = vunpack.c.h.b16 %v705
    %v887 = vunpack.c.l.b16 %v706
    %v888 = vunpack.c.l.b16 %v707
    %v889 = vunpack.c.h.b16 %v707
    %v890 = vunpack.c.l.b16 %v708
    %v891 = vunpack.c.l.b16 %v709
    %v892 = vunpack.c.h.b16 %v709
    %v893 = vunpack.c.l.b16 %v710
    %v894 = vunpack.c.l.b16 %v711
    %v895 = vunpack.c.h.b16 %v711
    %v896 = vunpack.c.l.b16 %v712
    %v897 = vunpack.c.l.b16 %v713
    %v898 = vunpack.c.h.b16 %v713
    %v899 = vunpack.c.l.b16 %v714
    %v900 = vunpack.c.l.b16 %v715
    %v901 = vunpack.c.h.b16 %v715
    %v902 = vunpack.c.l.b16 %v716
    %v903 = vunpack.c.l.b16 %v717
    %v904 = vunpack.c.h.b16 %v717
    %v905 = vunpack.c.l.b16 %v718
    %v906 = vunpack.c.l.b16 %v719
    %v907 = vunpack.c.h.b16 %v719
    %v908 = vunpack.c.l.b16 %v720
    %v909 = vunpack.c.l.b16 %v721
    %v910 = vunpack.c.h.b16 %v721
    %v911 = vunpack.c.l.b16 %v722
    %v912 = vunpack.c.l.b16 %v723
    %v913 = vunpack.c.h.b16 %v723
    %v914 = vunpack.c.l.b16 %v724
    %v915 = vpack.c.b16 %v822, %v819
    %v916 = vpack.c.b16 %v823, %v820
    %v917 = vpack.c.b16 %v824, %v821
    %v918 = vpack.c.b16 %v828, %v825
    %v919 = vpack.c.b16 %v829, %v826
    %v920 = vpack.c.b16 %v830, %v827
    %v921 = vpack.c.b16 %v834, %v831
    %v922 = vpack.c.b16 %v835, %v832
    %v923 = vpack.c.b16 %v836, %v833
    %v924 = vpack.c.b16 %v840, %v837
    %v925 = vpack.c.b16 %v841, %v838
    %v926 = vpack.c.b16 %v842, %v839
    %v927 = vpack.c.b16 %v846, %v843
    %v928 = vpack.c.b16 %v847, %v844
    %v929 = vpack.c.b16 %v848, %v845
    %v930 = vpack.c.b16 %v852, %v849
    %v931 = vpack.c.b16 %v853, %v850
    %v932 = vpack.c.b16 %v854, %v851
    %v933 = vpack.c.b16 %v858, %v855
    %v934 = vpack.c.b16 %v859, %v856
    %v935 = vpack.c.b16 %v860, %v857
    %v936 = vpack.c.b16 %v864, %v861
    %v937 = vpack.c.b16 %v865, %v862
    %v938 = vpack.c.b16 %v866, %v863
    %v939 = vpack.c.b16 %v870, %v867
    %v940 = vpack.c.b16 %v871, %v868
    %v941 = vpack.c.b16 %v872, %v869
    %v942 = vpack.c.b16 %v876, %v873
    %v943 = vpack.c.b16 %v877, %v874
    %v944 = vpack.c.b16 %v878, %v875
    %v945 = vpack.c.b16 %v882, %v879
    %v946 = vpack.c.b16 %v883, %v880
    %v947 = vpack.c.b16 %v884, %v881
    %v948 = vpack.c.b16 %v888, %v885
    %v949 = vpack.c.b16 %v889, %v886
    %v950 = vpack.c.b16 %v890, %v887
    %v951 = vpack.c.b16 %v894, %v891
    %v952 = vpack.c.b16 %v895, %v892
    %v953 = vpack.c.b16 %v896, %v893
    %v954 = vpack.c.b16 %v900, %v897
    %v955 = vpack.c.b16 %v901, %v898
    %v956 = vpack.c.b16 %v902, %v899
    %v957 = vpack.c.b16 %v906, %v903
    %v958 = vpack.c.b16 %v907, %v904
    %v959 = vpack.c.b16 %v908, %v905
    %v960 = vpack.c.b16 %v912, %v909
    %v961 = vpack.c.b16 %v913, %v910
    %v962 = vpack.c.b16 %v914, %v911
    %1011 = vmatprep.subr.bf16.mxu0 %v916
    %1012 = vmatpush1.bf16.msra.mxu0 %v915
    %1013 = vmatprep.subr.bf16.mxu0 %v919
    %1014 = vmatpush1.bf16.msra.mxu0 %v918
    %1015 = vmatprep.subr.bf16.mxu0 %v922
    %1016 = vmatpush1.bf16.msra.mxu0 %v921
    %1017 = vmatprep.subr.bf16.mxu0 %v925
    %1018 = vmatpush1.bf16.msra.mxu0 %v924
    %1019 = vmatprep.subr.bf16.mxu0 %v928
    %1020 = vmatpush1.bf16.msra.mxu0 %v927
    %1021 = vmatprep.subr.bf16.mxu0 %v931
    %1022 = vmatpush1.bf16.msra.mxu0 %v930
    %1023 = vmatprep.subr.bf16.mxu0 %v934
    %1024 = vmatpush1.bf16.msra.mxu0 %v933
    %1025 = vmatprep.subr.bf16.mxu0 %v937
    %1026 = vmatpush1.bf16.msra.mxu0 %v936
    %1027 = vmatprep.subr.bf16.mxu0 %v940
    %1028 = vmatpush1.bf16.msra.mxu0 %v939
    %1029 = vmatprep.subr.bf16.mxu0 %v943
    %1030 = vmatpush1.bf16.msra.mxu0 %v942
    %1031 = vmatprep.subr.bf16.mxu0 %v946
    %1032 = vmatpush1.bf16.msra.mxu0 %v945
    %1033 = vmatprep.subr.bf16.mxu0 %v949
    %1034 = vmatpush1.bf16.msra.mxu0 %v948
    %1035 = vmatprep.subr.bf16.mxu0 %v952
    %1036 = vmatpush1.bf16.msra.mxu0 %v951
    %1037 = vmatprep.subr.bf16.mxu0 %v955
    %1038 = vmatpush1.bf16.msra.mxu0 %v954
    %1039 = vmatprep.subr.bf16.mxu0 %v958
    %1040 = vmatpush1.bf16.msra.mxu0 %v957
    %1041 = vmatprep.subr.bf16.mxu0 %v961
    %1042 = vmatpush1.bf16.msra.mxu0 %v960
    %1043 = vmatprep.mubr.bf16.mxu0 %v660
    %1044 = vmatmul.mubr.bf16.gmra.mrb[0].mxu0 %v659
    %v1045 = vpop.f32.mrb[0].mxu0
    %v1046 = vadd.f32 %v746, %v1045
    %v1047 = vpop.f32.mrb[0].mxu0
    %v1048 = vadd.f32 %v750, %v1047
    %v1049 = vpop.f32.mrb[0].mxu0
    %v1050 = vpop.f32.mrb[0].mxu0
    %1051 = vdwg.mxu0
    %1052 = vmatprep.subr.bf16.mxu0 0
    %1053 = vmatpush1.bf16.msra.mxu0 %v917
    %1054 = vmatprep.subr.bf16.mxu0 0
    %1055 = vmatpush1.bf16.msra.mxu0 %v920
    %1056 = vmatprep.subr.bf16.mxu0 0
    %1057 = vmatpush1.bf16.msra.mxu0 %v923
    %1058 = vmatprep.subr.bf16.mxu0 0
    %1059 = vmatpush1.bf16.msra.mxu0 %v926
    %1060 = vmatprep.subr.bf16.mxu0 0
    %1061 = vmatpush1.bf16.msra.mxu0 %v929
    %1062 = vmatprep.subr.bf16.mxu0 0
    %1063 = vmatpush1.bf16.msra.mxu0 %v932
    %1064 = vmatprep.subr.bf16.mxu0 0
    %1065 = vmatpush1.bf16.msra.mxu0 %v935
    %1066 = vmatprep.subr.bf16.mxu0 0
    %1067 = vmatpush1.bf16.msra.mxu0 %v938
    %1068 = vmatprep.subr.bf16.mxu0 0
    %1069 = vmatpush1.bf16.msra.mxu0 %v941
    %1070 = vmatprep.subr.bf16.mxu0 0
    %1071 = vmatpush1.bf16.msra.mxu0 %v944
    %1072 = vmatprep.subr.bf16.mxu0 0
    %1073 = vmatpush1.bf16.msra.mxu0 %v947
    %1074 = vmatprep.subr.bf16.mxu0 0
    %1075 = vmatpush1.bf16.msra.mxu0 %v950
    %1076 = vmatprep.subr.bf16.mxu0 0
    %1077 = vmatpush1.bf16.msra.mxu0 %v953
    %1078 = vmatprep.subr.bf16.mxu0 0
    %1079 = vmatpush1.bf16.msra.mxu0 %v956
    %1080 = vmatprep.subr.bf16.mxu0 0
    %1081 = vmatpush1.bf16.msra.mxu0 %v959
    %1082 = vmatprep.subr.bf16.mxu0 0
    %1083 = vmatpush1.bf16.msra.mxu0 %v962
    %1084 = vmatprep.mubr.bf16.mxu0 %v660
    %1085 = vmatmul.mubr.bf16.gmra.mrb[0].mxu0 %v659
    %v1086 = vpop.f32.mrb[0].mxu0
    %v1087 = vadd.f32 %v754, %v1086
    %v1088 = vpop.f32.mrb[0].mxu0
    %v1089 = vpop.f32.mrb[0].mxu0
    %v1090 = vpop.f32.mrb[0].mxu0
    %1091 = vdwg.mxu0
    %v1095 = vcombine.low %v1046, %v1048
    %v1097 = vunpack.c.l.s4 1983009808
    %v1098 = vunpack.c.0.s8 %v1097
    %v1099 = vlaneseq
    %v1100 = vshrl.u32 %v1099, 7
    %v1101 = vsub.s32 %v1098, %v1100
    %v1102 = vrot.slane %v1095, %v1101
    %v1104 = vunpack.c.l.s4 1983009808
    %v1105 = vunpack.c.0.s8 %v1104
    %v1106 = vlaneseq
    %v1107 = vshrl.u32 %v1106, 7
    %v1108 = vsub.s32 %v1105, %v1107
    %v1109 = vrot.slane %v1087, %v1108
    %v1110 = vcombine.low %v1102, %v1109
    %vm1112 = vcmask 1041408
    %vm1113 = vcmask 1043458
    %vm1114 = vmor %vm1113, %vm1112
    %vm1115 = vcmask 259076
    %vm1116 = vmor %vm1115, %vm1114
    %1117 = vst.msk [vmem:[#allocation2] sm:$0x3f] %vm1116, %v1110
    %v1118 = vld [vmem:[%s9] sm:$0xff]
    %v1119 = vld [vmem:[%s9 + $0x8] sm:$0xf]
    %v1120 = vld [vmem:[%s9 + $0xc] sm:$0xff]
    %v1121 = vld [vmem:[%s9 + $0x14] sm:$0xf]
    %v1122 = vld [vmem:[%s9 + $0x18] sm:$0xff]
    %v1123 = vld [vmem:[%s9 + $0x20] sm:$0xf]
    %v1124 = vld [vmem:[%s9 + $0x24] sm:$0xff]
    %v1125 = vld [vmem:[%s9 + $0x2c] sm:$0xf]
    %v1126 = vld [vmem:[%s9 + $0x30] sm:$0xff]
    %v1127 = vld [vmem:[%s9 + $0x38] sm:$0xf]
    %v1128 = vld [vmem:[%s9 + $0x3c] sm:$0xff]
    %v1129 = vld [vmem:[%s9 + $0x44] sm:$0xf]
    %v1130 = vld [vmem:[%s9 + $0x48] sm:$0xff]
    %v1131 = vld [vmem:[%s9 + $0x50] sm:$0xf]
    %v1132 = vld [vmem:[%s9 + $0x54] sm:$0xff]
    %v1133 = vld [vmem:[%s9 + $0x5c] sm:$0xf]
    %v1134 = vld [vmem:[%s9 + $0x60] sm:$0xff]
    %v1135 = vld [vmem:[%s9 + $0x68] sm:$0xf]
    %v1136 = vld [vmem:[%s9 + $0x6c] sm:$0xff]
    %v1137 = vld [vmem:[%s9 + $0x74] sm:$0xf]
    %v1138 = vld [vmem:[%s9 + $0x78] sm:$0xff]
    %v1139 = vld [vmem:[%s9 + $0x80] sm:$0xf]
    %v1140 = vld [vmem:[%s9 + $0x84] sm:$0xff]
    %v1141 = vld [vmem:[%s9 + $0x8c] sm:$0xf]
    %v1142 = vld [vmem:[%s9 + $0x90] sm:$0xff]
    %v1143 = vld [vmem:[%s9 + $0x98] sm:$0xf]
    %v1144 = vld [vmem:[%s9 + $0x9c] sm:$0xff]
    %v1145 = vld [vmem:[%s9 + $0xa4] sm:$0xf]
    %v1146 = vld [vmem:[%s9 + $0xa8] sm:$0xff]
    %v1147 = vld [vmem:[%s9 + $0xb0] sm:$0xf]
    %v1148 = vld [vmem:[%s9 + $0xb4] sm:$0xff]
    %v1149 = vld [vmem:[%s9 + $0xbc] sm:$0xf]
    %v1150 = vld [vmem:[%s9 + $0xc0] sm:$0xff]
    %v1151 = vld [vmem:[%s9 + $0xc8] sm:$0xf]
    %v1152 = vld [vmem:[%s9 + $0xcc] sm:$0xff]
    %v1153 = vld [vmem:[%s9 + $0xd4] sm:$0xf]
    %v1154 = vld [vmem:[%s9 + $0xd8] sm:$0xff]
    %v1155 = vld [vmem:[%s9 + $0xe0] sm:$0xf]
    %v1156 = vld [vmem:[%s9 + $0xe4] sm:$0xff]
    %v1157 = vld [vmem:[%s9 + $0xec] sm:$0xf]
    %v1158 = vld [vmem:[%s9 + $0xf0] sm:$0xff]
    %v1159 = vld [vmem:[%s9 + $0xf8] sm:$0xf]
    %v1160 = vld [vmem:[%s9 + $0xfc] sm:$0xff]
    %v1161 = vld [vmem:[%s9 + $0x104] sm:$0xf]
    %v1162 = vld [vmem:[%s9 + $0x108] sm:$0xff]
    %v1163 = vld [vmem:[%s9 + $0x110] sm:$0xf]
    %v1164 = vld [vmem:[%s9 + $0x114] sm:$0xff]
    %v1165 = vld [vmem:[%s9 + $0x11c] sm:$0xf]
    %v1166 = vld [vmem:[%s9 + $0x120] sm:$0xff]
    %v1167 = vld [vmem:[%s9 + $0x128] sm:$0xf]
    %v1168 = vld [vmem:[%s9 + $0x12c] sm:$0xff]
    %v1169 = vld [vmem:[%s9 + $0x134] sm:$0xf]
    %v1170 = vld [vmem:[%s9 + $0x138] sm:$0xff]
    %v1171 = vld [vmem:[%s9 + $0x140] sm:$0xf]
    %v1172 = vld [vmem:[%s9 + $0x144] sm:$0xff]
    %v1173 = vld [vmem:[%s9 + $0x14c] sm:$0xf]
    %v1174 = vld [vmem:[%s9 + $0x150] sm:$0xff]
    %v1175 = vld [vmem:[%s9 + $0x158] sm:$0xf]
    %v1176 = vld [vmem:[%s9 + $0x15c] sm:$0xff]
    %v1177 = vld [vmem:[%s9 + $0x164] sm:$0xf]
    %v1178 = vld [vmem:[%s9 + $0x168] sm:$0xff]
    %v1179 = vld [vmem:[%s9 + $0x170] sm:$0xf]
    %v1180 = vld [vmem:[%s9 + $0x174] sm:$0xff]
    %v1181 = vld [vmem:[%s9 + $0x17c] sm:$0xf]
    %v1182 = vld [vmem:[%s10] sm:$0x7]
    %v1183 = vunpack.c.l.bf16 %v1182
    %v1185 = vlaneseq
    %v1186 = vshrl.u32 %v1185, 7
    %v1187 = vsub.s32 0, %v1186
    %v1188 = vrot.slane %v1183, %v1187
    %v1189 = vlaneseq
    %v1190 = vshrl.u32 %v1189, 7
    %v1191 = vsub.s32 2, %v1190
    %v1192 = vrot.slane %v1183, %v1191
    %v1193 = vlaneseq
    %v1194 = vshrl.u32 %v1193, 7
    %v1195 = vsub.s32 4, %v1194
    %v1196 = vrot.slane %v1183, %v1195
    %v1200 = vlaneseq
    %v1201 = vshrl.u32 %v1200, 7
    %v1202 = vsub.s32 0, %v1201
    %v1203 = vrot.slane %v1188, %v1202
    %v1204 = vlaneseq
    %v1205 = vshrl.u32 %v1204, 7
    %v1206 = vsub.s32 0, %v1205
    %v1207 = vrot.slane %v1192, %v1206
    %v1208 = vlaneseq
    %v1209 = vshrl.u32 %v1208, 7
    %v1210 = vsub.s32 0, %v1209
    %v1211 = vrot.slane %v1196, %v1210
    %v1276 = vunpack.c.l.b16 %v1118
    %v1277 = vunpack.c.h.b16 %v1118
    %v1278 = vunpack.c.l.b16 %v1119
    %v1279 = vunpack.c.l.b16 %v1120
    %v1280 = vunpack.c.h.b16 %v1120
    %v1281 = vunpack.c.l.b16 %v1121
    %v1282 = vunpack.c.l.b16 %v1122
    %v1283 = vunpack.c.h.b16 %v1122
    %v1284 = vunpack.c.l.b16 %v1123
    %v1285 = vunpack.c.l.b16 %v1124
    %v1286 = vunpack.c.h.b16 %v1124
    %v1287 = vunpack.c.l.b16 %v1125
    %v1288 = vunpack.c.l.b16 %v1126
    %v1289 = vunpack.c.h.b16 %v1126
    %v1290 = vunpack.c.l.b16 %v1127
    %v1291 = vunpack.c.l.b16 %v1128
    %v1292 = vunpack.c.h.b16 %v1128
    %v1293 = vunpack.c.l.b16 %v1129
    %v1294 = vunpack.c.l.b16 %v1130
    %v1295 = vunpack.c.h.b16 %v1130
    %v1296 = vunpack.c.l.b16 %v1131
    %v1297 = vunpack.c.l.b16 %v1132
    %v1298 = vunpack.c.h.b16 %v1132
    %v1299 = vunpack.c.l.b16 %v1133
    %v1300 = vunpack.c.l.b16 %v1134
    %v1301 = vunpack.c.h.b16 %v1134
    %v1302 = vunpack.c.l.b16 %v1135
    %v1303 = vunpack.c.l.b16 %v1136
    %v1304 = vunpack.c.h.b16 %v1136
    %v1305 = vunpack.c.l.b16 %v1137
    %v1306 = vunpack.c.l.b16 %v1138
    %v1307 = vunpack.c.h.b16 %v1138
    %v1308 = vunpack.c.l.b16 %v1139
    %v1309 = vunpack.c.l.b16 %v1140
    %v1310 = vunpack.c.h.b16 %v1140
    %v1311 = vunpack.c.l.b16 %v1141
    %v1312 = vunpack.c.l.b16 %v1142
    %v1313 = vunpack.c.h.b16 %v1142
    %v1314 = vunpack.c.l.b16 %v1143
    %v1315 = vunpack.c.l.b16 %v1144
    %v1316 = vunpack.c.h.b16 %v1144
    %v1317 = vunpack.c.l.b16 %v1145
    %v1318 = vunpack.c.l.b16 %v1146
    %v1319 = vunpack.c.h.b16 %v1146
    %v1320 = vunpack.c.l.b16 %v1147
    %v1321 = vunpack.c.l.b16 %v1148
    %v1322 = vunpack.c.h.b16 %v1148
    %v1323 = vunpack.c.l.b16 %v1149
    %v1324 = vunpack.c.l.b16 %v1150
    %v1325 = vunpack.c.h.b16 %v1150
    %v1326 = vunpack.c.l.b16 %v1151
    %v1327 = vunpack.c.l.b16 %v1152
    %v1328 = vunpack.c.h.b16 %v1152
    %v1329 = vunpack.c.l.b16 %v1153
    %v1330 = vunpack.c.l.b16 %v1154
    %v1331 = vunpack.c.h.b16 %v1154
    %v1332 = vunpack.c.l.b16 %v1155
    %v1333 = vunpack.c.l.b16 %v1156
    %v1334 = vunpack.c.h.b16 %v1156
    %v1335 = vunpack.c.l.b16 %v1157
    %v1336 = vunpack.c.l.b16 %v1158
    %v1337 = vunpack.c.h.b16 %v1158
    %v1338 = vunpack.c.l.b16 %v1159
    %v1339 = vunpack.c.l.b16 %v1160
    %v1340 = vunpack.c.h.b16 %v1160
    %v1341 = vunpack.c.l.b16 %v1161
    %v1342 = vunpack.c.l.b16 %v1162
    %v1343 = vunpack.c.h.b16 %v1162
    %v1344 = vunpack.c.l.b16 %v1163
    %v1345 = vunpack.c.l.b16 %v1164
    %v1346 = vunpack.c.h.b16 %v1164
    %v1347 = vunpack.c.l.b16 %v1165
    %v1348 = vunpack.c.l.b16 %v1166
    %v1349 = vunpack.c.h.b16 %v1166
    %v1350 = vunpack.c.l.b16 %v1167
    %v1351 = vunpack.c.l.b16 %v1168
    %v1352 = vunpack.c.h.b16 %v1168
    %v1353 = vunpack.c.l.b16 %v1169
    %v1354 = vunpack.c.l.b16 %v1170
    %v1355 = vunpack.c.h.b16 %v1170
    %v1356 = vunpack.c.l.b16 %v1171
    %v1357 = vunpack.c.l.b16 %v1172
    %v1358 = vunpack.c.h.b16 %v1172
    %v1359 = vunpack.c.l.b16 %v1173
    %v1360 = vunpack.c.l.b16 %v1174
    %v1361 = vunpack.c.h.b16 %v1174
    %v1362 = vunpack.c.l.b16 %v1175
    %v1363 = vunpack.c.l.b16 %v1176
    %v1364 = vunpack.c.h.b16 %v1176
    %v1365 = vunpack.c.l.b16 %v1177
    %v1366 = vunpack.c.l.b16 %v1178
    %v1367 = vunpack.c.h.b16 %v1178
    %v1368 = vunpack.c.l.b16 %v1179
    %v1369 = vunpack.c.l.b16 %v1180
    %v1370 = vunpack.c.h.b16 %v1180
    %v1371 = vunpack.c.l.b16 %v1181
    %v1372 = vpack.c.b16 %v1279, %v1276
    %v1373 = vpack.c.b16 %v1280, %v1277
    %v1374 = vpack.c.b16 %v1281, %v1278
    %v1375 = vpack.c.b16 %v1285, %v1282
    %v1376 = vpack.c.b16 %v1286, %v1283
    %v1377 = vpack.c.b16 %v1287, %v1284
    %v1378 = vpack.c.b16 %v1291, %v1288
    %v1379 = vpack.c.b16 %v1292, %v1289
    %v1380 = vpack.c.b16 %v1293, %v1290
    %v1381 = vpack.c.b16 %v1297, %v1294
    %v1382 = vpack.c.b16 %v1298, %v1295
    %v1383 = vpack.c.b16 %v1299, %v1296
    %v1384 = vpack.c.b16 %v1303, %v1300
    %v1385 = vpack.c.b16 %v1304, %v1301
    %v1386 = vpack.c.b16 %v1305, %v1302
    %v1387 = vpack.c.b16 %v1309, %v1306
    %v1388 = vpack.c.b16 %v1310, %v1307
    %v1389 = vpack.c.b16 %v1311, %v1308
    %v1390 = vpack.c.b16 %v1315, %v1312
    %v1391 = vpack.c.b16 %v1316, %v1313
    %v1392 = vpack.c.b16 %v1317, %v1314
    %v1393 = vpack.c.b16 %v1321, %v1318
    %v1394 = vpack.c.b16 %v1322, %v1319
    %v1395 = vpack.c.b16 %v1323, %v1320
    %v1396 = vpack.c.b16 %v1327, %v1324
    %v1397 = vpack.c.b16 %v1328, %v1325
    %v1398 = vpack.c.b16 %v1329, %v1326
    %v1399 = vpack.c.b16 %v1333, %v1330
    %v1400 = vpack.c.b16 %v1334, %v1331
    %v1401 = vpack.c.b16 %v1335, %v1332
    %v1402 = vpack.c.b16 %v1339, %v1336
    %v1403 = vpack.c.b16 %v1340, %v1337
    %v1404 = vpack.c.b16 %v1341, %v1338
    %v1405 = vpack.c.b16 %v1345, %v1342
    %v1406 = vpack.c.b16 %v1346, %v1343
    %v1407 = vpack.c.b16 %v1347, %v1344
    %v1408 = vpack.c.b16 %v1351, %v1348
    %v1409 = vpack.c.b16 %v1352, %v1349
    %v1410 = vpack.c.b16 %v1353, %v1350
    %v1411 = vpack.c.b16 %v1357, %v1354
    %v1412 = vpack.c.b16 %v1358, %v1355
    %v1413 = vpack.c.b16 %v1359, %v1356
    %v1414 = vpack.c.b16 %v1363, %v1360
    %v1415 = vpack.c.b16 %v1364, %v1361
    %v1416 = vpack.c.b16 %v1365, %v1362
    %v1417 = vpack.c.b16 %v1369, %v1366
    %v1418 = vpack.c.b16 %v1370, %v1367
    %v1419 = vpack.c.b16 %v1371, %v1368
    %1468 = vmatprep.subr.bf16.mxu0 %v1373
    %1469 = vmatpush1.bf16.msra.mxu0 %v1372
    %1470 = vmatprep.subr.bf16.mxu0 %v1376
    %1471 = vmatpush1.bf16.msra.mxu0 %v1375
    %1472 = vmatprep.subr.bf16.mxu0 %v1379
    %1473 = vmatpush1.bf16.msra.mxu0 %v1378
    %1474 = vmatprep.subr.bf16.mxu0 %v1382
    %1475 = vmatpush1.bf16.msra.mxu0 %v1381
    %1476 = vmatprep.subr.bf16.mxu0 %v1385
    %1477 = vmatpush1.bf16.msra.mxu0 %v1384
    %1478 = vmatprep.subr.bf16.mxu0 %v1388
    %1479 = vmatpush1.bf16.msra.mxu0 %v1387
    %1480 = vmatprep.subr.bf16.mxu0 %v1391
    %1481 = vmatpush1.bf16.msra.mxu0 %v1390
    %1482 = vmatprep.subr.bf16.mxu0 %v1394
    %1483 = vmatpush1.bf16.msra.mxu0 %v1393
    %1484 = vmatprep.subr.bf16.mxu0 %v1397
    %1485 = vmatpush1.bf16.msra.mxu0 %v1396
    %1486 = vmatprep.subr.bf16.mxu0 %v1400
    %1487 = vmatpush1.bf16.msra.mxu0 %v1399
    %1488 = vmatprep.subr.bf16.mxu0 %v1403
    %1489 = vmatpush1.bf16.msra.mxu0 %v1402
    %1490 = vmatprep.subr.bf16.mxu0 %v1406
    %1491 = vmatpush1.bf16.msra.mxu0 %v1405
    %1492 = vmatprep.subr.bf16.mxu0 %v1409
    %1493 = vmatpush1.bf16.msra.mxu0 %v1408
    %1494 = vmatprep.subr.bf16.mxu0 %v1412
    %1495 = vmatpush1.bf16.msra.mxu0 %v1411
    %1496 = vmatprep.subr.bf16.mxu0 %v1415
    %1497 = vmatpush1.bf16.msra.mxu0 %v1414
    %1498 = vmatprep.subr.bf16.mxu0 %v1418
    %1499 = vmatpush1.bf16.msra.mxu0 %v1417
    %1500 = vmatprep.mubr.bf16.mxu0 %v660
    %1501 = vmatmul.mubr.bf16.gmra.mrb[0].mxu0 %v659
    %v1502 = vpop.f32.mrb[0].mxu0
    %v1503 = vadd.f32 %v1203, %v1502
    %v1504 = vpop.f32.mrb[0].mxu0
    %v1505 = vadd.f32 %v1207, %v1504
    %v1506 = vpop.f32.mrb[0].mxu0
    %v1507 = vpop.f32.mrb[0].mxu0
    %1508 = vdwg.mxu0
    %1509 = vmatprep.subr.bf16.mxu0 0
    %1510 = vmatpush1.bf16.msra.mxu0 %v1374
    %1511 = vmatprep.subr.bf16.mxu0 0
    %1512 = vmatpush1.bf16.msra.mxu0 %v1377
    %1513 = vmatprep.subr.bf16.mxu0 0
    %1514 = vmatpush1.bf16.msra.mxu0 %v1380
    %1515 = vmatprep.subr.bf16.mxu0 0
    %1516 = vmatpush1.bf16.msra.mxu0 %v1383
    %1517 = vmatprep.subr.bf16.mxu0 0
    %1518 = vmatpush1.bf16.msra.mxu0 %v1386
    %1519 = vmatprep.subr.bf16.mxu0 0
    %1520 = vmatpush1.bf16.msra.mxu0 %v1389
    %1521 = vmatprep.subr.bf16.mxu0 0
    %1522 = vmatpush1.bf16.msra.mxu0 %v1392
    %1523 = vmatprep.subr.bf16.mxu0 0
    %1524 = vmatpush1.bf16.msra.mxu0 %v1395
    %1525 = vmatprep.subr.bf16.mxu0 0
    %1526 = vmatpush1.bf16.msra.mxu0 %v1398
    %1527 = vmatprep.subr.bf16.mxu0 0
    %1528 = vmatpush1.bf16.msra.mxu0 %v1401
    %1529 = vmatprep.subr.bf16.mxu0 0
    %1530 = vmatpush1.bf16.msra.mxu0 %v1404
    %1531 = vmatprep.subr.bf16.mxu0 0
    %1532 = vmatpush1.bf16.msra.mxu0 %v1407
    %1533 = vmatprep.subr.bf16.mxu0 0
    %1534 = vmatpush1.bf16.msra.mxu0 %v1410
    %1535 = vmatprep.subr.bf16.mxu0 0
    %1536 = vmatpush1.bf16.msra.mxu0 %v1413
    %1537 = vmatprep.subr.bf16.mxu0 0
    %1538 = vmatpush1.bf16.msra.mxu0 %v1416
    %1539 = vmatprep.subr.bf16.mxu0 0
    %1540 = vmatpush1.bf16.msra.mxu0 %v1419
    %1541 = vmatprep.mubr.bf16.mxu0 %v660
    %1542 = vmatmul.mubr.bf16.gmra.mrb[0].mxu0 %v659
    %v1543 = vpop.f32.mrb[0].mxu0
    %v1544 = vadd.f32 %v1211, %v1543
    %v1545 = vpop.f32.mrb[0].mxu0
    %v1546 = vpop.f32.mrb[0].mxu0
    %v1547 = vpop.f32.mrb[0].mxu0
    %1548 = vdwg.mxu0
    %v1552 = vcombine.low %v1503, %v1505
    %v1554 = vunpack.c.l.s4 1983009808
    %v1555 = vunpack.c.0.s8 %v1554
    %v1556 = vlaneseq
    %v1557 = vshrl.u32 %v1556, 7
    %v1558 = vsub.s32 %v1555, %v1557
    %v1559 = vrot.slane %v1552, %v1558
    %v1561 = vunpack.c.l.s4 1983009808
    %v1562 = vunpack.c.0.s8 %v1561
    %v1563 = vlaneseq
    %v1564 = vshrl.u32 %v1563, 7
    %v1565 = vsub.s32 %v1562, %v1564
    %v1566 = vrot.slane %v1544, %v1565
    %v1567 = vcombine.low %v1559, %v1566
    %1569 = vst.msk [vmem:[#allocation4] sm:$0x3f] %vm1116, %v1567
    // Predicated region
    $region46: #{tpu_custom_call.1} parent=1 // pred_check
      _
    $region47: #{tpu_custom_call.1} parent=1 // pred_check_branch
      %1571 = sbr.rel (0) target = $region49
    $region48: #{tpu_custom_call.1} parent=1 // pred_region
      %s1573 = ssub.s32 96, 96
      %1574 = vsyncadd [#allocation3], %s1573
      %s1576 = sshll.u32 [#allocation2], 4
      %s1577 = int_to_ptr.vmem [resolvable:$true] %s1576
      %1579 = dma.vmem_to_hbm [thread:$0]  %s1577, 96, %s11, [#allocation3]
    $region49: #{tpu_custom_call.1} parent=1 // pred_fallthru
      _
    // Predicated region
    $region50: #{tpu_custom_call.1} parent=1 // pred_check
      _
    $region51: #{tpu_custom_call.1} parent=1 // pred_check_branch
      %1581 = sbr.rel (0) target = $region53
    $region52: #{tpu_custom_call.1} parent=1 // pred_region
      %s1583 = ssub.s32 96, 96
      %1584 = vsyncadd [#allocation5], %s1583
      %s1586 = sshll.u32 [#allocation4], 4
      %s1587 = int_to_ptr.vmem [resolvable:$true] %s1586
      %1589 = dma.vmem_to_hbm [thread:$0]  %s1587, 96, %s12, [#allocation5]
    $region53: #{tpu_custom_call.1} parent=1 // pred_fallthru
      _
    // Predicated region
    $region54: #{tpu_custom_call.1} parent=1 // pred_check
      _
    $region55: #{tpu_custom_call.1} parent=1 // pred_check_branch
      %1591 = sbr.rel (0) target = $region57
    $region56: #{tpu_custom_call.1} parent=1 // pred_region
      %1592 = dma.done [#allocation3], 96
    $region57: #{tpu_custom_call.1} parent=1 // pred_fallthru
      _
    // Predicated region
    $region58: #{tpu_custom_call.1} parent=1 // pred_check
      _
    $region59: #{tpu_custom_call.1} parent=1 // pred_check_branch
      %1594 = sbr.rel (0) target = $region61
    $region60: #{tpu_custom_call.1} parent=1 // pred_region
      %1595 = dma.done [#allocation5], 96
    $region61: #{tpu_custom_call.1} parent=1 // pred_fallthru
      _
    %1596 = vsyncpa [#allocation3], 1
    %1597 = vsyncpa [#allocation5], 1

</llo_original>
